<compile_context>
chip_gen: v5e
topology: v5e:2x2
jax: 0.10.0
libtpu: 0.0.40
codegen_flags: <defaults>
</compile_context>

<pallas_src>
import jax
import jax.numpy as jnp
from jax.experimental import pallas as pl
from jax.experimental.pallas import tpu as pltpu


def _round_up(x, n):
    return ((x + n - 1) // n) * n


def _ffn_kernel(x_ref, w1_ref, b1_ref, w2_ref, b2_ref, o_ref, h_ref):
    # x_ref:  (tm, F_in)   f32 tile of flattened input rows (cast to bf16 here)
    # w1_ref: (F_in, dff)  bf16 first-layer weight (resident across the grid)
    # b1_ref: (1, dff)     f32 first-layer bias
    # w2_ref: (dff, F_out) bf16 second-layer weight (resident across the grid)
    # b2_ref: (1, F_out)   f32 second-layer bias
    # o_ref:  (tm, F_out)  output tile (f32 by default)
    # h_ref:  (tm, dff)    bf16 VMEM scratch for the hidden activation
    h = jnp.dot(x_ref[...].astype(jnp.bfloat16), w1_ref[...],
                preferred_element_type=jnp.float32)
    # Bias + ReLU in f32 (v5e has no bf16 VPU path), then store the hidden
    # activation in bf16 so the second dot reads half the bytes.
    h_ref[...] = jnp.maximum(h + b1_ref[...], 0.0).astype(jnp.bfloat16)
    y = jnp.dot(h_ref[...], w2_ref[...], preferred_element_type=jnp.float32)
    o_ref[...] = (y + b2_ref[...]).astype(o_ref.dtype)


def pointwise_ffn(x, w1, b1, w2, b2, *, tm=1024, out_dtype=None):
    """x: [B, N, obs_num, F_in] float32. Returns [B, N, obs_num, F_out].

    w1: [F_in, dff], b1: [1, dff], w2: [dff, F_out], b2: [1, F_out]  (float32).
    out_dtype: output dtype (default: x.dtype). Passing jnp.bfloat16 halves
    output HBM traffic (recommended on v6e/v7x if downstream tolerates it).
    """
    orig_shape = x.shape
    f_in = orig_shape[-1]
    dff = w1.shape[1]
    f_out = w2.shape[1]
    out_dtype = jnp.dtype(out_dtype) if out_dtype is not None else x.dtype

    # No cast / no pad in the wrapper: the kernel streams f32 x straight from
    # HBM (a single pass) and casts to bf16 in VMEM.
    x2d = x.reshape(-1, f_in)
    m = x2d.shape[0]

    # Row tile: default 1024 (sweep 512/1024/2048). Always give the grid at
    # least 2 steps when M > 8 so the "parallel" axis can shard across v7x's
    # two TensorCores; round to a sublane multiple of 8. A ragged last tile is
    # fine: OOB rows are garbage in VMEM but their writeback is masked.
    # Note: tm_eff depends on M, so distinct flattened row counts recompile.
    tm_eff = max(8, min(tm, _round_up(pl.cdiv(m, 2), 8)))
    grid = (pl.cdiv(m, tm_eff),)

    # bf16 weights: halves resident-weight VMEM + DMA bytes; f32 accumulation
    # happens via preferred_element_type inside the kernel. Weight cast is a
    # tiny one-time op (~1.25 MiB), unlike casting x.
    w1_bf16 = w1.astype(jnp.bfloat16)
    w2_bf16 = w2.astype(jnp.bfloat16)

    cost = pl.CostEstimate(
        flops=2 * m * (f_in * dff + dff * f_out),
        transcendentals=0,
        bytes_accessed=(m * f_in * x.dtype.itemsize           # x (f32 in)
                        + (f_in * dff + dff * f_out) * 2      # bf16 weights
                        + (dff + f_out) * 4                   # f32 biases
                        + m * f_out * out_dtype.itemsize),    # output
    )

    out2d = pl.pallas_call(
        _ffn_kernel,
        out_shape=jax.ShapeDtypeStruct((m, f_out), out_dtype),
        grid_spec=pltpu.PrefetchScalarGridSpec(
            num_scalar_prefetch=0,
            grid=grid,
            in_specs=[
                pl.BlockSpec((tm_eff, f_in), lambda i: (i, 0)),   # x rows tile
                pl.BlockSpec((f_in, dff), lambda i: (0, 0)),      # W1 (resident)
                pl.BlockSpec((1, dff), lambda i: (0, 0)),         # b1
                pl.BlockSpec((dff, f_out), lambda i: (0, 0)),     # W2 (resident)
                pl.BlockSpec((1, f_out), lambda i: (0, 0)),       # b2
            ],
            out_specs=pl.BlockSpec((tm_eff, f_out), lambda i: (i, 0)),
            scratch_shapes=[pltpu.VMEM((tm_eff, dff), jnp.bfloat16)],
        ),
        compiler_params=pltpu.CompilerParams(
            dimension_semantics=("parallel",),
            # Realistic budget: even tm=2048 needs ~14 MiB of buffers. 32 MiB
            # leaves headroom for Mosaic scratch, well under v7x's 64 MiB VMEM.
            vmem_limit_bytes=32 << 20,
        ),
        cost_estimate=cost,
    )(x2d, w1_bf16, b1, w2_bf16, b2)

    return out2d.reshape(*orig_shape[:-1], f_out)


def init_params(key, in_features=256, out_features=256, dff=1024):
    """Deterministic init mimicking PyTorch Linear's U(-1/sqrt(fan_in), +...)."""
    k1, k2, k3, k4 = jax.random.split(key, 4)
    bound1 = 1.0 / jnp.sqrt(in_features)
    bound2 = 1.0 / jnp.sqrt(dff)
    # weights stored [in, out] (transposed vs. PyTorch's [out, in])
    w1 = jax.random.uniform(k1, (in_features, dff), jnp.float32, -bound1, bound1)
    b1 = jax.random.uniform(k2, (1, dff), jnp.float32, -bound1, bound1)
    w2 = jax.random.uniform(k3, (dff, out_features), jnp.float32, -bound2, bound2)
    b2 = jax.random.uniform(k4, (1, out_features), jnp.float32, -bound2, bound2)
    return w1, b1, w2, b2


if __name__ == "__main__":
    key = jax.random.PRNGKey(0)
    kx, kp = jax.random.split(key)

    # small shapes consistent with forward: [B, N, obs_num, feat_len=256]
    B, N, obs_num, feat_len = 2, 2, 8, 256
    in_features, out_features, dff = 256, 256, 1024

    x = jax.random.normal(kx, (B, N, obs_num, feat_len), jnp.float32)
    w1, b1, w2, b2 = init_params(kp, in_features, out_features, dff)

    y = pointwise_ffn(x, w1, b1, w2, b2)
    y = jax.block_until_ready(y)
    assert y.shape == (B, N, obs_num, out_features)
    assert y.dtype == jnp.float32

    # Reference 1: same bf16-operand / f32-accumulate recipe in plain JAX
    x2d = x.reshape(-1, feat_len)
    h_ref = jnp.maximum(
        jnp.dot(x2d.astype(jnp.bfloat16), w1.astype(jnp.bfloat16),
                preferred_element_type=jnp.float32) + b1, 0.0)
    ref_bf16 = jnp.dot(h_ref.astype(jnp.bfloat16), w2.astype(jnp.bfloat16),
                       preferred_element_type=jnp.float32) + b2
    ref_bf16 = ref_bf16.reshape(B, N, obs_num, out_features)
    assert jnp.allclose(y, ref_bf16, atol=2e-3, rtol=2e-3)

    # Reference 2: pure f32 math (loose tolerance, bf16 operand rounding)
    ref_f32 = (jnp.maximum(x2d @ w1 + b1, 0.0) @ w2 + b2).reshape(
        B, N, obs_num, out_features)
    assert jnp.allclose(y, ref_f32, atol=5e-2, rtol=5e-2)

    print("KERNEL_OK")
</pallas_src>

<mosaic_0001>
module attributes {stable_mosaic.version = 11 : i64} {
  func.func @_ffn_kernel(%arg0: i32, %arg1: memref<16x256xf32, #tpu.memory_space<vmem>>, %arg2: memref<256x1024xbf16, #tpu.memory_space<vmem>>, %arg3: memref<1x1024xf32, #tpu.memory_space<vmem>>, %arg4: memref<1024x256xbf16, #tpu.memory_space<vmem>>, %arg5: memref<1x256xf32, #tpu.memory_space<vmem>>, %arg6: memref<16x256xf32, #tpu.memory_space<vmem>>, %arg7: memref<16x1024xbf16, #tpu.memory_space<vmem>>) attributes {dimension_semantics = [#tpu.dimension_semantics<parallel>], iteration_bounds = array<i64: 2>, scalar_prefetch = 0 : i64, scratch_operands = 1 : i64, tpu.core_type = #tpu.core_type<tc>, window_params = [{transform_indices = @transform_0, window_bounds = array<i64: 16, 256>}, {pipeline_mode = #tpu.pipeline_mode<synchronous>, transform_indices = @transform_1, window_bounds = array<i64: 256, 1024>}, {pipeline_mode = #tpu.pipeline_mode<synchronous>, transform_indices = @transform_2, window_bounds = array<i64: 1, 1024>}, {pipeline_mode = #tpu.pipeline_mode<synchronous>, transform_indices = @transform_3, window_bounds = array<i64: 1024, 256>}, {pipeline_mode = #tpu.pipeline_mode<synchronous>, transform_indices = @transform_4, window_bounds = array<i64: 1, 256>}, {transform_indices = @transform_5, window_bounds = array<i64: 16, 256>}]} {
    %c0 = arith.constant 0 : index
    %c0_0 = arith.constant 0 : index
    %0 = vector.load %arg1[%c0, %c0_0] : memref<16x256xf32, #tpu.memory_space<vmem>>, vector<16x256xf32>
    %1 = arith.truncf %0 : vector<16x256xf32> to vector<16x256xbf16>
    %c0_1 = arith.constant 0 : index
    %c0_2 = arith.constant 0 : index
    %2 = vector.load %arg2[%c0_1, %c0_2] : memref<256x1024xbf16, #tpu.memory_space<vmem>>, vector<256x1024xbf16>
    %cst = arith.constant dense<0.000000e+00> : vector<16x1024xf32>
    %3 = tpu.matmul %1, %2, %cst {dimension_numbers = #tpu.dot_dimension_numbers<[1], [0], [0], [1], [0, 0, 1, 1], [], []>} : vector<16x256xbf16>, vector<256x1024xbf16>, vector<16x1024xf32> -> vector<16x1024xf32>
    %c0_3 = arith.constant 0 : index
    %c0_4 = arith.constant 0 : index
    %4 = vector.load %arg3[%c0_3, %c0_4] : memref<1x1024xf32, #tpu.memory_space<vmem>>, vector<1x1024xf32>
    %5 = vector.broadcast %4 : vector<1x1024xf32> to vector<16x1024xf32>
    %6 = arith.addf %3, %5 : vector<16x1024xf32>
    %cst_5 = arith.constant 0.000000e+00 : f32
    %7 = vector.broadcast %cst_5 : f32 to vector<16x1024xf32>
    %8 = arith.maximumf %6, %7 : vector<16x1024xf32>
    %9 = arith.truncf %8 : vector<16x1024xf32> to vector<16x1024xbf16>
    %c0_6 = arith.constant 0 : index
    %c0_7 = arith.constant 0 : index
    %10 = vector.load %arg7[%c0_6, %c0_7] : memref<16x1024xbf16, #tpu.memory_space<vmem>>, vector<16x1024xbf16>
    tpu.vector_store %arg7[%c0_6, %c0_7], %9 {strides = array<i32>} : memref<16x1024xbf16, #tpu.memory_space<vmem>>, vector<16x1024xbf16>,
    %c0_8 = arith.constant 0 : index
    %c0_9 = arith.constant 0 : index
    %11 = vector.load %arg7[%c0_8, %c0_9] : memref<16x1024xbf16, #tpu.memory_space<vmem>>, vector<16x1024xbf16>
    %c0_10 = arith.constant 0 : index
    %c0_11 = arith.constant 0 : index
    %12 = vector.load %arg4[%c0_10, %c0_11] : memref<1024x256xbf16, #tpu.memory_space<vmem>>, vector<1024x256xbf16>
    %cst_12 = arith.constant dense<0.000000e+00> : vector<16x256xf32>
    %13 = tpu.matmul %11, %12, %cst_12 {dimension_numbers = #tpu.dot_dimension_numbers<[1], [0], [0], [1], [0, 0, 1, 1], [], []>} : vector<16x1024xbf16>, vector<1024x256xbf16>, vector<16x256xf32> -> vector<16x256xf32>
    %c0_13 = arith.constant 0 : index
    %c0_14 = arith.constant 0 : index
    %14 = vector.load %arg5[%c0_13, %c0_14] : memref<1x256xf32, #tpu.memory_space<vmem>>, vector<1x256xf32>
    %15 = vector.broadcast %14 : vector<1x256xf32> to vector<16x256xf32>
    %16 = arith.addf %13, %15 : vector<16x256xf32>
    %c0_15 = arith.constant 0 : index
    %c0_16 = arith.constant 0 : index
    %17 = vector.load %arg6[%c0_15, %c0_16] : memref<16x256xf32, #tpu.memory_space<vmem>>, vector<16x256xf32>
    tpu.vector_store %arg6[%c0_15, %c0_16], %16 {strides = array<i32>} : memref<16x256xf32, #tpu.memory_space<vmem>>, vector<16x256xf32>,
    return
  }
  func.func @transform_0(%arg0: i32) -> (i32, i32) {
    %c0_i32 = arith.constant 0 : i32
    %c0_i32_0 = arith.constant 0 : i32
    return %arg0, %c0_i32 : i32, i32
  }
  func.func @transform_1(%arg0: i32) -> (i32, i32) {
    %c0_i32 = arith.constant 0 : i32
    %c0_i32_0 = arith.constant 0 : i32
    %c0_i32_1 = arith.constant 0 : i32
    return %c0_i32, %c0_i32_0 : i32, i32
  }
  func.func @transform_2(%arg0: i32) -> (i32, i32) {
    %c0_i32 = arith.constant 0 : i32
    %c0_i32_0 = arith.constant 0 : i32
    %c0_i32_1 = arith.constant 0 : i32
    return %c0_i32, %c0_i32_0 : i32, i32
  }
  func.func @transform_3(%arg0: i32) -> (i32, i32) {
    %c0_i32 = arith.constant 0 : i32
    %c0_i32_0 = arith.constant 0 : i32
    %c0_i32_1 = arith.constant 0 : i32
    return %c0_i32, %c0_i32_0 : i32, i32
  }
  func.func @transform_4(%arg0: i32) -> (i32, i32) {
    %c0_i32 = arith.constant 0 : i32
    %c0_i32_0 = arith.constant 0 : i32
    %c0_i32_1 = arith.constant 0 : i32
    return %c0_i32, %c0_i32_0 : i32, i32
  }
  func.func @transform_5(%arg0: i32) -> (i32, i32) {
    %c0_i32 = arith.constant 0 : i32
    %c0_i32_0 = arith.constant 0 : i32
    return %arg0, %c0_i32 : i32, i32
  }
}

</mosaic_0001>

<llo_original>
// kernel: tpu_custom_call.1
$region0: #{tpu_custom_call.1}
  #allocation0 [shape = 'u32[]', space=smem, size = 0x4, offset = 0x4, fixed_abs, tag = 'smem constant byte address 0x4 - core index']
  #allocation1 [shape = 'u32[72,128]{1,0:T(1,128)}', space=vmem, size = 0x9000, scoped, tag = 'internal scratch']
  #allocation2 [shape = 'bf16[16,1024]{1,0:T(8,128)(2,1)}', space=vmem, size = 0x8000, scoped, tag = 'scratch operand']
  %s0 = inlined_call_operand.hbm [shape: f32[32,256], index: 0, kind: input, shape index: {}]
  %s1 = inlined_call_operand.hbm [shape: bf16[256,1024], index: 1, kind: input, shape index: {}]
  %s2 = inlined_call_operand.hbm [shape: f32[1,1024], index: 2, kind: input, shape index: {}]
  %s3 = inlined_call_operand.hbm [shape: bf16[1024,256], index: 3, kind: input, shape index: {}]
  %s4 = inlined_call_operand.vmem [shape: f32[1,256], index: 4, kind: input, shape index: {}]
  %s5 = inlined_call_operand.hbm [shape: f32[32,256], index: 5, kind: output, shape index: {}]
  %s6 = sld [smem:[#allocation0]]
  $region69: #{tpu_custom_call.1} parent=0
    _
  %s8 = ssub.s32 1, %s6
  %s9 = scalar_select 0, %s8, %s6
  $region1: #{tpu_custom_call.1} parent=0
    #allocation3 [shape = 'u8[32768]{0}', space=vmem, size = 0x8000, scoped, tag = 'input window, operand 0']
    #allocation4 [shape = 's32[2]{0}', space=sflag, size = 0x8, scoped, tag = 'scoped memory for tpu_custom_call.1']
    #allocation5 [shape = 's32[2]{0}', space=sflag, size = 0x8, scoped, tag = 'scoped memory for tpu_custom_call.1']
    #allocation6 [shape = 'u8[524288]{0}', space=vmem, size = 0x80000, scoped, tag = 'input window, operand 1, single buffered']
    #allocation7 [shape = 's32[1]{0}', space=sflag, size = 0x4, scoped, tag = 'scoped memory for tpu_custom_call.1']
    #allocation8 [shape = 'u8[4096]{0}', space=vmem, size = 0x1000, scoped, tag = 'input window, operand 2, single buffered']
    #allocation9 [shape = 'u8[524288]{0}', space=vmem, size = 0x80000, scoped, tag = 'input window, operand 3, single buffered']
    #allocation10 [shape = 's32[1]{0}', space=sflag, size = 0x4, scoped, tag = 'scoped memory for tpu_custom_call.1']
    #allocation11 [shape = 'u8[32768]{0}', space=vmem, size = 0x8000, scoped, tag = 'output window, operand 0']
    %10 = vsyncpa [#allocation4], 0
    %s11 = scalar_lea.sflag [#allocation4], 1
    %12 = vsyncpa %s11, 0
    %13 = vsyncpa [#allocation7], 0
    %14 = vsyncpa [#allocation10], 0
    %15 = vsyncpa [#allocation5], 0
    %s16 = scalar_lea.sflag [#allocation5], 1
    %17 = vsyncpa %s16, 0
    loop: start=0, step=1, limit=4
    $region2: #{tpu_custom_call.1} parent=1 // loop_pre_header
      _
    $region3: #{tpu_custom_call.1} parent=1 // loop_header
      %s19 = sphi 0, %s23
      %p20 = scmp.ge.s32.totalorder %s19, 4
      %s29 = sphi 0, %s31
      %s32 = sphi 0, %s29
      %s33 = sphi 0, %s32
      %s49 = sphi 0, %s33
      %s53 = sphi 0, %s53
      %s55 = sphi 0, %s53
      %s56 = sphi 0, %s55
      %s70 = sphi 0, %s56
      %s74 = sphi 0, %s74
      %s76 = sphi 0, %s74
      %s77 = sphi 0, %s76
      %s91 = sphi 0, %s77
      %s95 = sphi 0, %s95
      %s97 = sphi 0, %s95
      %s98 = sphi 0, %s97
      %s112 = sphi 0, %s98
      %s116 = sphi 0, %s116
      %s118 = sphi 0, %s116
      %s119 = sphi 0, %s118
      %s133 = sphi 0, %s119
      %s139 = sphi 0, %s141
      %s142 = sphi 0, %s139
      %s143 = sphi 0, %s142
      %s159 = sphi 0, %s143
    $region4: #{tpu_custom_call.1} parent=1 // loop_header_branch
      %22 = sbr.rel (%p20) target = $region8
    $region5: #{tpu_custom_call.1} parent=1 // loop_body
      %s24 = ssub.s32 %s19, 1
      %s25 = ssub.s32 %s19, 2
      %s26 = sadd.s32 %s19, 1
      %s27 = ssub.s32 %s19, %s26
      %p28 = scmp.eq.s32.totalorder %s27, 0
      %s30 = sadd.s32 %s29, 1
      %s31 = scalar_select %p28, %s29, %s30
      %p34 = pneg %p28
      %p35 = scmp.eq.s32.totalorder %s19, 1
      %p36 = por %p34, %p35
      %p37 = scmp.ne.s32.totalorder %s29, %s32
      %p38 = scmp.eq.s32.totalorder %s19, 0
      %p39 = por %p37, %p38
      %p40 = scmp.ne.s32.totalorder %s29, %s32
      %p41 = scmp.eq.s32.totalorder %s24, 1
      %p42 = por %p40, %p41
      %p43 = scmp.ne.s32.totalorder %s32, %s33
      %p44 = scmp.eq.s32.totalorder %s24, 0
      %p45 = por %p43, %p44
      %p46 = scmp.ne.s32.totalorder %s32, %s33
      %p47 = scmp.eq.s32.totalorder %s25, 1
      %p48 = por %p46, %p47
      %p50 = scmp.ne.s32.totalorder %s33, %s49
      %p51 = scmp.eq.s32.totalorder %s25, 0
      %p52 = por %p50, %p51
      %s54 = sadd.s32 %s53, 1
      %p57 = scmp.eq.s32.totalorder %s19, 1
      %p58 = scmp.ne.s32.totalorder %s53, %s55
      %p59 = scmp.eq.s32.totalorder %s19, 0
      %p60 = por %p58, %p59
      %p61 = scmp.ne.s32.totalorder %s53, %s55
      %p62 = scmp.eq.s32.totalorder %s24, 1
      %p63 = por %p61, %p62
      %p64 = scmp.ne.s32.totalorder %s55, %s56
      %p65 = scmp.eq.s32.totalorder %s24, 0
      %p66 = por %p64, %p65
      %p67 = scmp.ne.s32.totalorder %s55, %s56
      %p68 = scmp.eq.s32.totalorder %s25, 1
      %p69 = por %p67, %p68
      %p71 = scmp.ne.s32.totalorder %s56, %s70
      %p72 = scmp.eq.s32.totalorder %s25, 0
      %p73 = por %p71, %p72
      %s75 = sadd.s32 %s74, 1
      %p78 = scmp.eq.s32.totalorder %s19, 1
      %p79 = scmp.ne.s32.totalorder %s74, %s76
      %p80 = scmp.eq.s32.totalorder %s19, 0
      %p81 = por %p79, %p80
      %p82 = scmp.ne.s32.totalorder %s74, %s76
      %p83 = scmp.eq.s32.totalorder %s24, 1
      %p84 = por %p82, %p83
      %p85 = scmp.ne.s32.totalorder %s76, %s77
      %p86 = scmp.eq.s32.totalorder %s24, 0
      %p87 = por %p85, %p86
      %p88 = scmp.ne.s32.totalorder %s76, %s77
      %p89 = scmp.eq.s32.totalorder %s25, 1
      %p90 = por %p88, %p89
      %p92 = scmp.ne.s32.totalorder %s77, %s91
      %p93 = scmp.eq.s32.totalorder %s25, 0
      %p94 = por %p92, %p93
      %s96 = sadd.s32 %s95, 1
      %p99 = scmp.eq.s32.totalorder %s19, 1
      %p100 = scmp.ne.s32.totalorder %s95, %s97
      %p101 = scmp.eq.s32.totalorder %s19, 0
      %p102 = por %p100, %p101
      %p103 = scmp.ne.s32.totalorder %s95, %s97
      %p104 = scmp.eq.s32.totalorder %s24, 1
      %p105 = por %p103, %p104
      %p106 = scmp.ne.s32.totalorder %s97, %s98
      %p107 = scmp.eq.s32.totalorder %s24, 0
      %p108 = por %p106, %p107
      %p109 = scmp.ne.s32.totalorder %s97, %s98
      %p110 = scmp.eq.s32.totalorder %s25, 1
      %p111 = por %p109, %p110
      %p113 = scmp.ne.s32.totalorder %s98, %s112
      %p114 = scmp.eq.s32.totalorder %s25, 0
      %p115 = por %p113, %p114
      %s117 = sadd.s32 %s116, 1
      %p120 = scmp.eq.s32.totalorder %s19, 1
      %p121 = scmp.ne.s32.totalorder %s116, %s118
      %p122 = scmp.eq.s32.totalorder %s19, 0
      %p123 = por %p121, %p122
      %p124 = scmp.ne.s32.totalorder %s116, %s118
      %p125 = scmp.eq.s32.totalorder %s24, 1
      %p126 = por %p124, %p125
      %p127 = scmp.ne.s32.totalorder %s118, %s119
      %p128 = scmp.eq.s32.totalorder %s24, 0
      %p129 = por %p127, %p128
      %p130 = scmp.ne.s32.totalorder %s118, %s119
      %p131 = scmp.eq.s32.totalorder %s25, 1
      %p132 = por %p130, %p131
      %p134 = scmp.ne.s32.totalorder %s119, %s133
      %p135 = scmp.eq.s32.totalorder %s25, 0
      %p136 = por %p134, %p135
      %s137 = ssub.s32 %s19, %s26
      %p138 = scmp.eq.s32.totalorder %s137, 0
      %s140 = sadd.s32 %s139, 1
      %s141 = scalar_select %p138, %s139, %s140
      %p144 = pneg %p138
      %p145 = scmp.eq.s32.totalorder %s19, 1
      %p146 = por %p144, %p145
      %p147 = scmp.ne.s32.totalorder %s139, %s142
      %p148 = scmp.eq.s32.totalorder %s19, 0
      %p149 = por %p147, %p148
      %p150 = scmp.ne.s32.totalorder %s139, %s142
      %p151 = scmp.eq.s32.totalorder %s24, 1
      %p152 = por %p150, %p151
      %p153 = scmp.ne.s32.totalorder %s142, %s143
      %p154 = scmp.eq.s32.totalorder %s24, 0
      %p155 = por %p153, %p154
      %p156 = scmp.ne.s32.totalorder %s142, %s143
      %p157 = scmp.eq.s32.totalorder %s25, 1
      %p158 = por %p156, %p157
      %p160 = scmp.ne.s32.totalorder %s143, %s159
      %p161 = scmp.eq.s32.totalorder %s25, 0
      %p162 = por %p160, %p161
      %p163 = scmp.le.s32.totalorder 1, %s19
      %p164 = scmp.lt.s32.totalorder %s19, 3
      %p165 = pnand %p163, %p164
      %p166 = pneg %p165
      // Predicated region
      $region9: #{tpu_custom_call.1} parent=5 // pred_check
        _
      $region10: #{tpu_custom_call.1} parent=5 // pred_check_branch
        %168 = sbr.rel (%p165) target = $region12
      $region11: #{tpu_custom_call.1} parent=5 // pred_region
        %s169 = ssub.s32 %s19, 1
        // Predicated region
        $region13: #{tpu_custom_call.1} parent=11 // pred_check
          %p170 = pneg %p66
        $region14: #{tpu_custom_call.1} parent=11 // pred_check_branch
          %172 = sbr.rel (%p170) target = $region16
        $region15: #{tpu_custom_call.1} parent=11 // pred_region
          %174 = vsyncadd [#allocation7], 0
          %s175 = sshll.u32 %s1, 4
          %s176 = int_to_ptr.hbm [resolvable:$true] %s175
          %s177 = sshll.u32 [#allocation6], 4
          %s178 = int_to_ptr.vmem [resolvable:$true] %s177
          %183 = dma.hbm_to_vmem [thread:$0]  %s176, 16384, %s178, [#allocation7], 512, 512, 32
        $region16: #{tpu_custom_call.1} parent=11 // pred_fallthru
          _
        // Predicated region
        $region17: #{tpu_custom_call.1} parent=11 // pred_check
          %p184 = pneg %p87
        $region18: #{tpu_custom_call.1} parent=11 // pred_check_branch
          %186 = sbr.rel (%p184) target = $region20
        $region19: #{tpu_custom_call.1} parent=11 // pred_region
          %188 = vsyncadd [#allocation7], 0
          %s190 = sshll.u32 %s2, 4
          %s191 = int_to_ptr.hbm [resolvable:$true] %s190
          %s192 = sshll.u32 [#allocation8], 4
          %s193 = int_to_ptr.vmem [resolvable:$true] %s192
          %195 = dma.hbm_to_vmem [thread:$0]  %s191, 128, %s193, [#allocation7]
        $region20: #{tpu_custom_call.1} parent=11 // pred_fallthru
          _
        // Predicated region
        $region21: #{tpu_custom_call.1} parent=11 // pred_check
          %p196 = pneg %p108
        $region22: #{tpu_custom_call.1} parent=11 // pred_check_branch
          %198 = sbr.rel (%p196) target = $region24
        $region23: #{tpu_custom_call.1} parent=11 // pred_region
          %200 = vsyncadd [#allocation10], 0
          %s201 = sshll.u32 %s3, 4
          %s202 = int_to_ptr.hbm [resolvable:$true] %s201
          %s203 = sshll.u32 [#allocation9], 4
          %s204 = int_to_ptr.vmem [resolvable:$true] %s203
          %209 = dma.hbm_to_vmem [thread:$0]  %s202, 16384, %s204, [#allocation10], 128, 128, 8
        $region24: #{tpu_custom_call.1} parent=11 // pred_fallthru
          _
        // Predicated region
        $region25: #{tpu_custom_call.1} parent=11 // pred_check
          %p210 = pneg %p129
        $region26: #{tpu_custom_call.1} parent=11 // pred_check_branch
          %212 = sbr.rel (%p210) target = $region28
        $region27: #{tpu_custom_call.1} parent=11 // pred_region
          _
        $region28: #{tpu_custom_call.1} parent=11 // pred_fallthru
          _
      $region12: #{tpu_custom_call.1} parent=5 // pred_fallthru
        _
      %p213 = scmp.lt.s32.totalorder %s19, 2
      // Predicated region
      $region29: #{tpu_custom_call.1} parent=5 // pred_check
        %p214 = pneg %p213
      $region30: #{tpu_custom_call.1} parent=5 // pred_check_branch
        %216 = sbr.rel (%p214) target = $region32
      $region31: #{tpu_custom_call.1} parent=5 // pred_region
        // Predicated region
        $region33: #{tpu_custom_call.1} parent=31 // pred_check
          %p217 = pneg %p39
        $region34: #{tpu_custom_call.1} parent=31 // pred_check_branch
          %219 = sbr.rel (%p217) target = $region36
        $region35: #{tpu_custom_call.1} parent=31 // pred_region
          %s220 = sand.u32 %s29, 1
          %s221 = scalar_lea.sflag [#allocation4], %s220
          %s222 = sand.u32 %s29, 1
          %s223 = smul.addr %s222, 32
          %s224 = scalar_lea.vmem [#allocation3], %s223
          %s225 = smul.u32 2, %s19
          %227 = vsyncadd %s221, 0
          %s228 = smul.addr %s225, 2
          %s229 = smul.addr %s228, 8
          %s230 = scalar_lea.hbm %s0, %s229
          %s231 = sshll.u32 %s230, 4
          %s232 = int_to_ptr.hbm [resolvable:$true] %s231
          %s233 = sshll.u32 %s224, 4
          %s234 = int_to_ptr.vmem [resolvable:$true] %s233
          %239 = dma.hbm_to_vmem [thread:$0]  %s232, 512, %s234, %s221, 256, 256, 16
        $region36: #{tpu_custom_call.1} parent=31 // pred_fallthru
          _
      $region32: #{tpu_custom_call.1} parent=5 // pred_fallthru
        _
      %p240 = scmp.le.s32.totalorder 1, %s19
      %p241 = scmp.lt.s32.totalorder %s19, 3
      %p242 = pnand %p240, %p241
      %p243 = pneg %p242
      // Predicated region
      $region37: #{tpu_custom_call.1} parent=5 // pred_check
        _
      $region38: #{tpu_custom_call.1} parent=5 // pred_check_branch
        %245 = sbr.rel (%p242) target = $region40
      $region39: #{tpu_custom_call.1} parent=5 // pred_region
        %s246 = ssub.s32 %s19, 1
        %s247 = sand.u32 %s32, 1
        %s248 = scalar_lea.sflag [#allocation4], %s247
        %s249 = sand.u32 %s32, 1
        %s250 = smul.addr %s249, 32
        %s251 = scalar_lea.vmem [#allocation3], %s250
        // Predicated region
        $region41: #{tpu_custom_call.1} parent=39 // pred_check
          %p252 = pneg %p45
        $region42: #{tpu_custom_call.1} parent=39 // pred_check_branch
          %254 = sbr.rel (%p252) target = $region44
        $region43: #{tpu_custom_call.1} parent=39 // pred_region
          %256 = dma.done %s248, 512
        $region44: #{tpu_custom_call.1} parent=39 // pred_fallthru
          _
        // Predicated region
        $region45: #{tpu_custom_call.1} parent=39 // pred_check
          %p257 = pneg %p66
        $region46: #{tpu_custom_call.1} parent=39 // pred_check_branch
          %259 = sbr.rel (%p257) target = $region48
        $region47: #{tpu_custom_call.1} parent=39 // pred_region
          %261 = dma.done [#allocation7], 16384
        $region48: #{tpu_custom_call.1} parent=39 // pred_fallthru
          _
        // Predicated region
        $region49: #{tpu_custom_call.1} parent=39 // pred_check
          %p262 = pneg %p87
        $region50: #{tpu_custom_call.1} parent=39 // pred_check_branch
          %264 = sbr.rel (%p262) target = $region52
        $region51: #{tpu_custom_call.1} parent=39 // pred_region
          %266 = dma.done [#allocation7], 128
        $region52: #{tpu_custom_call.1} parent=39 // pred_fallthru
          _
        // Predicated region
        $region53: #{tpu_custom_call.1} parent=39 // pred_check
          %p267 = pneg %p108
        $region54: #{tpu_custom_call.1} parent=39 // pred_check_branch
          %269 = sbr.rel (%p267) target = $region56
        $region55: #{tpu_custom_call.1} parent=39 // pred_region
          %271 = dma.done [#allocation10], 16384
        $region56: #{tpu_custom_call.1} parent=39 // pred_fallthru
          _
        %s272 = sand.u32 %s32, 1
        %s273 = scalar_lea.sflag [#allocation4], %s272
        %s274 = sand.u32 %s32, 1
        %s275 = smul.addr %s274, 32
        %s276 = scalar_lea.vmem [#allocation3], %s275
        %p277 = pneg %p45
        %p278 = pneg %p42
        %p279 = pneg %p66
        %p280 = pneg %p63
        %p281 = pneg %p87
        %p282 = pneg %p84
        %p283 = pneg %p108
        %p284 = pneg %p105
        %p285 = pneg %p129
        %p286 = pneg %p126
        %p287 = pneg %p155
        %p288 = pneg %p152
        %s289 = sand.u32 %s142, 1
        %s290 = scalar_lea.sflag [#allocation5], %s289
        %s291 = sand.u32 %s142, 1
        %s292 = smul.addr %s291, 32
        %s293 = scalar_lea.vmem [#allocation11], %s292
        %s294 = smul.u32 2, %s24
        %s295 = smul.u32 2, %s24
        %v296 = vld [vmem:[%s251] sm:$0xff]
        %v297 = vld [vmem:[%s251 + $0x8] sm:$0xff]
        %v298 = vld [vmem:[%s251 + $0x10] sm:$0xff]
        %v299 = vld [vmem:[%s251 + $0x18] sm:$0xff]
        %v300 = vpack.c.bf16 %v298, %v296
        %v301 = vpack.c.bf16 %v299, %v297
        %v302 = vld [vmem:[#allocation6] sm:$0xff]
        %v303 = vld [vmem:[#allocation6 + $0x8] sm:$0xff]
        %v304 = vld [vmem:[#allocation6 + $0x10] sm:$0xff]
        %v305 = vld [vmem:[#allocation6 + $0x18] sm:$0xff]
        %v306 = vld [vmem:[#allocation6 + $0x20] sm:$0xff]
        %v307 = vld [vmem:[#allocation6 + $0x28] sm:$0xff]
        %v308 = vld [vmem:[#allocation6 + $0x30] sm:$0xff]
        %v309 = vld [vmem:[#allocation6 + $0x38] sm:$0xff]
        %v310 = vld [vmem:[#allocation6 + $0x40] sm:$0xff]
        %v311 = vld [vmem:[#allocation6 + $0x48] sm:$0xff]
        %v312 = vld [vmem:[#allocation6 + $0x50] sm:$0xff]
        %v313 = vld [vmem:[#allocation6 + $0x58] sm:$0xff]
        %v314 = vld [vmem:[#allocation6 + $0x60] sm:$0xff]
        %v315 = vld [vmem:[#allocation6 + $0x68] sm:$0xff]
        %v316 = vld [vmem:[#allocation6 + $0x70] sm:$0xff]
        %v317 = vld [vmem:[#allocation6 + $0x78] sm:$0xff]
        %v318 = vld [vmem:[#allocation6 + $0x80] sm:$0xff]
        %v319 = vld [vmem:[#allocation6 + $0x88] sm:$0xff]
        %v320 = vld [vmem:[#allocation6 + $0x90] sm:$0xff]
        %v321 = vld [vmem:[#allocation6 + $0x98] sm:$0xff]
        %v322 = vld [vmem:[#allocation6 + $0xa0] sm:$0xff]
        %v323 = vld [vmem:[#allocation6 + $0xa8] sm:$0xff]
        %v324 = vld [vmem:[#allocation6 + $0xb0] sm:$0xff]
        %v325 = vld [vmem:[#allocation6 + $0xb8] sm:$0xff]
        %v326 = vld [vmem:[#allocation6 + $0xc0] sm:$0xff]
        %v327 = vld [vmem:[#allocation6 + $0xc8] sm:$0xff]
        %v328 = vld [vmem:[#allocation6 + $0xd0] sm:$0xff]
        %v329 = vld [vmem:[#allocation6 + $0xd8] sm:$0xff]
        %v330 = vld [vmem:[#allocation6 + $0xe0] sm:$0xff]
        %v331 = vld [vmem:[#allocation6 + $0xe8] sm:$0xff]
        %v332 = vld [vmem:[#allocation6 + $0xf0] sm:$0xff]
        %v333 = vld [vmem:[#allocation6 + $0xf8] sm:$0xff]
        %v334 = vld [vmem:[#allocation6 + $0x100] sm:$0xff]
        %v335 = vld [vmem:[#allocation6 + $0x108] sm:$0xff]
        %v336 = vld [vmem:[#allocation6 + $0x110] sm:$0xff]
        %v337 = vld [vmem:[#allocation6 + $0x118] sm:$0xff]
        %v338 = vld [vmem:[#allocation6 + $0x120] sm:$0xff]
        %v339 = vld [vmem:[#allocation6 + $0x128] sm:$0xff]
        %v340 = vld [vmem:[#allocation6 + $0x130] sm:$0xff]
        %v341 = vld [vmem:[#allocation6 + $0x138] sm:$0xff]
        %v342 = vld [vmem:[#allocation6 + $0x140] sm:$0xff]
        %v343 = vld [vmem:[#allocation6 + $0x148] sm:$0xff]
        %v344 = vld [vmem:[#allocation6 + $0x150] sm:$0xff]
        %v345 = vld [vmem:[#allocation6 + $0x158] sm:$0xff]
        %v346 = vld [vmem:[#allocation6 + $0x160] sm:$0xff]
        %v347 = vld [vmem:[#allocation6 + $0x168] sm:$0xff]
        %v348 = vld [vmem:[#allocation6 + $0x170] sm:$0xff]
        %v349 = vld [vmem:[#allocation6 + $0x178] sm:$0xff]
        %v350 = vld [vmem:[#allocation6 + $0x180] sm:$0xff]
        %v351 = vld [vmem:[#allocation6 + $0x188] sm:$0xff]
        %v352 = vld [vmem:[#allocation6 + $0x190] sm:$0xff]
        %v353 = vld [vmem:[#allocation6 + $0x198] sm:$0xff]
        %v354 = vld [vmem:[#allocation6 + $0x1a0] sm:$0xff]
        %v355 = vld [vmem:[#allocation6 + $0x1a8] sm:$0xff]
        %v356 = vld [vmem:[#allocation6 + $0x1b0] sm:$0xff]
        %v357 = vld [vmem:[#allocation6 + $0x1b8] sm:$0xff]
        %v358 = vld [vmem:[#allocation6 + $0x1c0] sm:$0xff]
        %v359 = vld [vmem:[#allocation6 + $0x1c8] sm:$0xff]
        %v360 = vld [vmem:[#allocation6 + $0x1d0] sm:$0xff]
        %v361 = vld [vmem:[#allocation6 + $0x1d8] sm:$0xff]
        %v362 = vld [vmem:[#allocation6 + $0x1e0] sm:$0xff]
        %v363 = vld [vmem:[#allocation6 + $0x1e8] sm:$0xff]
        %v364 = vld [vmem:[#allocation6 + $0x1f0] sm:$0xff]
        %v365 = vld [vmem:[#allocation6 + $0x1f8] sm:$0xff]
        %v366 = vld [vmem:[#allocation6 + $0x200] sm:$0xff]
        %v367 = vld [vmem:[#allocation6 + $0x208] sm:$0xff]
        %v368 = vld [vmem:[#allocation6 + $0x210] sm:$0xff]
        %v369 = vld [vmem:[#allocation6 + $0x218] sm:$0xff]
        %v370 = vld [vmem:[#allocation6 + $0x220] sm:$0xff]
        %v371 = vld [vmem:[#allocation6 + $0x228] sm:$0xff]
        %v372 = vld [vmem:[#allocation6 + $0x230] sm:$0xff]
        %v373 = vld [vmem:[#allocation6 + $0x238] sm:$0xff]
        %v374 = vld [vmem:[#allocation6 + $0x240] sm:$0xff]
        %v375 = vld [vmem:[#allocation6 + $0x248] sm:$0xff]
        %v376 = vld [vmem:[#allocation6 + $0x250] sm:$0xff]
        %v377 = vld [vmem:[#allocation6 + $0x258] sm:$0xff]
        %v378 = vld [vmem:[#allocation6 + $0x260] sm:$0xff]
        %v379 = vld [vmem:[#allocation6 + $0x268] sm:$0xff]
        %v380 = vld [vmem:[#allocation6 + $0x270] sm:$0xff]
        %v381 = vld [vmem:[#allocation6 + $0x278] sm:$0xff]
        %v382 = vld [vmem:[#allocation6 + $0x280] sm:$0xff]
        %v383 = vld [vmem:[#allocation6 + $0x288] sm:$0xff]
        %v384 = vld [vmem:[#allocation6 + $0x290] sm:$0xff]
        %v385 = vld [vmem:[#allocation6 + $0x298] sm:$0xff]
        %v386 = vld [vmem:[#allocation6 + $0x2a0] sm:$0xff]
        %v387 = vld [vmem:[#allocation6 + $0x2a8] sm:$0xff]
        %v388 = vld [vmem:[#allocation6 + $0x2b0] sm:$0xff]
        %v389 = vld [vmem:[#allocation6 + $0x2b8] sm:$0xff]
        %v390 = vld [vmem:[#allocation6 + $0x2c0] sm:$0xff]
        %v391 = vld [vmem:[#allocation6 + $0x2c8] sm:$0xff]
        %v392 = vld [vmem:[#allocation6 + $0x2d0] sm:$0xff]
        %v393 = vld [vmem:[#allocation6 + $0x2d8] sm:$0xff]
        %v394 = vld [vmem:[#allocation6 + $0x2e0] sm:$0xff]
        %v395 = vld [vmem:[#allocation6 + $0x2e8] sm:$0xff]
        %v396 = vld [vmem:[#allocation6 + $0x2f0] sm:$0xff]
        %v397 = vld [vmem:[#allocation6 + $0x2f8] sm:$0xff]
        %v398 = vld [vmem:[#allocation6 + $0x300] sm:$0xff]
        %v399 = vld [vmem:[#allocation6 + $0x308] sm:$0xff]
        %v400 = vld [vmem:[#allocation6 + $0x310] sm:$0xff]
        %v401 = vld [vmem:[#allocation6 + $0x318] sm:$0xff]
        %v402 = vld [vmem:[#allocation6 + $0x320] sm:$0xff]
        %v403 = vld [vmem:[#allocation6 + $0x328] sm:$0xff]
        %v404 = vld [vmem:[#allocation6 + $0x330] sm:$0xff]
        %v405 = vld [vmem:[#allocation6 + $0x338] sm:$0xff]
        %v406 = vld [vmem:[#allocation6 + $0x340] sm:$0xff]
        %v407 = vld [vmem:[#allocation6 + $0x348] sm:$0xff]
        %v408 = vld [vmem:[#allocation6 + $0x350] sm:$0xff]
        %v409 = vld [vmem:[#allocation6 + $0x358] sm:$0xff]
        %v410 = vld [vmem:[#allocation6 + $0x360] sm:$0xff]
        %v411 = vld [vmem:[#allocation6 + $0x368] sm:$0xff]
        %v412 = vld [vmem:[#allocation6 + $0x370] sm:$0xff]
        %v413 = vld [vmem:[#allocation6 + $0x378] sm:$0xff]
        %v414 = vld [vmem:[#allocation6 + $0x380] sm:$0xff]
        %v415 = vld [vmem:[#allocation6 + $0x388] sm:$0xff]
        %v416 = vld [vmem:[#allocation6 + $0x390] sm:$0xff]
        %v417 = vld [vmem:[#allocation6 + $0x398] sm:$0xff]
        %v418 = vld [vmem:[#allocation6 + $0x3a0] sm:$0xff]
        %v419 = vld [vmem:[#allocation6 + $0x3a8] sm:$0xff]
        %v420 = vld [vmem:[#allocation6 + $0x3b0] sm:$0xff]
        %v421 = vld [vmem:[#allocation6 + $0x3b8] sm:$0xff]
        %v422 = vld [vmem:[#allocation6 + $0x3c0] sm:$0xff]
        %v423 = vld [vmem:[#allocation6 + $0x3c8] sm:$0xff]
        %v424 = vld [vmem:[#allocation6 + $0x3d0] sm:$0xff]
        %v425 = vld [vmem:[#allocation6 + $0x3d8] sm:$0xff]
        %v426 = vld [vmem:[#allocation6 + $0x3e0] sm:$0xff]
        %v427 = vld [vmem:[#allocation6 + $0x3e8] sm:$0xff]
        %v428 = vld [vmem:[#allocation6 + $0x3f0] sm:$0xff]
        %v429 = vld [vmem:[#allocation6 + $0x3f8] sm:$0xff]
        %v430 = vld [vmem:[#allocation8] sm:$0xff]
        %v432 = vperm.slane %v430, 0
        %v433 = vperm.slane %v430, 1
        %v434 = vperm.slane %v430, 2
        %v435 = vperm.slane %v430, 3
        %v436 = vperm.slane %v430, 4
        %v437 = vperm.slane %v430, 5
        %v438 = vperm.slane %v430, 6
        %v439 = vperm.slane %v430, 7
        %v576 = vunpack.c.l.b16 %v302
        %v577 = vunpack.c.h.b16 %v302
        %v578 = vunpack.c.l.b16 %v303
        %v579 = vunpack.c.h.b16 %v303
        %v580 = vunpack.c.l.b16 %v304
        %v581 = vunpack.c.h.b16 %v304
        %v582 = vunpack.c.l.b16 %v305
        %v583 = vunpack.c.h.b16 %v305
        %v584 = vunpack.c.l.b16 %v306
        %v585 = vunpack.c.h.b16 %v306
        %v586 = vunpack.c.l.b16 %v307
        %v587 = vunpack.c.h.b16 %v307
        %v588 = vunpack.c.l.b16 %v308
        %v589 = vunpack.c.h.b16 %v308
        %v590 = vunpack.c.l.b16 %v309
        %v591 = vunpack.c.h.b16 %v309
        %v592 = vunpack.c.l.b16 %v310
        %v593 = vunpack.c.h.b16 %v310
        %v594 = vunpack.c.l.b16 %v311
        %v595 = vunpack.c.h.b16 %v311
        %v596 = vunpack.c.l.b16 %v312
        %v597 = vunpack.c.h.b16 %v312
        %v598 = vunpack.c.l.b16 %v313
        %v599 = vunpack.c.h.b16 %v313
        %v600 = vunpack.c.l.b16 %v314
        %v601 = vunpack.c.h.b16 %v314
        %v602 = vunpack.c.l.b16 %v315
        %v603 = vunpack.c.h.b16 %v315
        %v604 = vunpack.c.l.b16 %v316
        %v605 = vunpack.c.h.b16 %v316
        %v606 = vunpack.c.l.b16 %v317
        %v607 = vunpack.c.h.b16 %v317
        %v608 = vunpack.c.l.b16 %v318
        %v609 = vunpack.c.h.b16 %v318
        %v610 = vunpack.c.l.b16 %v319
        %v611 = vunpack.c.h.b16 %v319
        %v612 = vunpack.c.l.b16 %v320
        %v613 = vunpack.c.h.b16 %v320
        %v614 = vunpack.c.l.b16 %v321
        %v615 = vunpack.c.h.b16 %v321
        %v616 = vunpack.c.l.b16 %v322
        %v617 = vunpack.c.h.b16 %v322
        %v618 = vunpack.c.l.b16 %v323
        %v619 = vunpack.c.h.b16 %v323
        %v620 = vunpack.c.l.b16 %v324
        %v621 = vunpack.c.h.b16 %v324
        %v622 = vunpack.c.l.b16 %v325
        %v623 = vunpack.c.h.b16 %v325
        %v624 = vunpack.c.l.b16 %v326
        %v625 = vunpack.c.h.b16 %v326
        %v626 = vunpack.c.l.b16 %v327
        %v627 = vunpack.c.h.b16 %v327
        %v628 = vunpack.c.l.b16 %v328
        %v629 = vunpack.c.h.b16 %v328
        %v630 = vunpack.c.l.b16 %v329
        %v631 = vunpack.c.h.b16 %v329
        %v632 = vunpack.c.l.b16 %v330
        %v633 = vunpack.c.h.b16 %v330
        %v634 = vunpack.c.l.b16 %v331
        %v635 = vunpack.c.h.b16 %v331
        %v636 = vunpack.c.l.b16 %v332
        %v637 = vunpack.c.h.b16 %v332
        %v638 = vunpack.c.l.b16 %v333
        %v639 = vunpack.c.h.b16 %v333
        %v640 = vunpack.c.l.b16 %v334
        %v641 = vunpack.c.h.b16 %v334
        %v642 = vunpack.c.l.b16 %v335
        %v643 = vunpack.c.h.b16 %v335
        %v644 = vunpack.c.l.b16 %v336
        %v645 = vunpack.c.h.b16 %v336
        %v646 = vunpack.c.l.b16 %v337
        %v647 = vunpack.c.h.b16 %v337
        %v648 = vunpack.c.l.b16 %v338
        %v649 = vunpack.c.h.b16 %v338
        %v650 = vunpack.c.l.b16 %v339
        %v651 = vunpack.c.h.b16 %v339
        %v652 = vunpack.c.l.b16 %v340
        %v653 = vunpack.c.h.b16 %v340
        %v654 = vunpack.c.l.b16 %v341
        %v655 = vunpack.c.h.b16 %v341
        %v656 = vunpack.c.l.b16 %v342
        %v657 = vunpack.c.h.b16 %v342
        %v658 = vunpack.c.l.b16 %v343
        %v659 = vunpack.c.h.b16 %v343
        %v660 = vunpack.c.l.b16 %v344
        %v661 = vunpack.c.h.b16 %v344
        %v662 = vunpack.c.l.b16 %v345
        %v663 = vunpack.c.h.b16 %v345
        %v664 = vunpack.c.l.b16 %v346
        %v665 = vunpack.c.h.b16 %v346
        %v666 = vunpack.c.l.b16 %v347
        %v667 = vunpack.c.h.b16 %v347
        %v668 = vunpack.c.l.b16 %v348
        %v669 = vunpack.c.h.b16 %v348
        %v670 = vunpack.c.l.b16 %v349
        %v671 = vunpack.c.h.b16 %v349
        %v672 = vunpack.c.l.b16 %v350
        %v673 = vunpack.c.h.b16 %v350
        %v674 = vunpack.c.l.b16 %v351
        %v675 = vunpack.c.h.b16 %v351
        %v676 = vunpack.c.l.b16 %v352
        %v677 = vunpack.c.h.b16 %v352
        %v678 = vunpack.c.l.b16 %v353
        %v679 = vunpack.c.h.b16 %v353
        %v680 = vunpack.c.l.b16 %v354
        %v681 = vunpack.c.h.b16 %v354
        %v682 = vunpack.c.l.b16 %v355
        %v683 = vunpack.c.h.b16 %v355
        %v684 = vunpack.c.l.b16 %v356
        %v685 = vunpack.c.h.b16 %v356
        %v686 = vunpack.c.l.b16 %v357
        %v687 = vunpack.c.h.b16 %v357
        %v688 = vunpack.c.l.b16 %v358
        %v689 = vunpack.c.h.b16 %v358
        %v690 = vunpack.c.l.b16 %v359
        %v691 = vunpack.c.h.b16 %v359
        %v692 = vunpack.c.l.b16 %v360
        %v693 = vunpack.c.h.b16 %v360
        %v694 = vunpack.c.l.b16 %v361
        %v695 = vunpack.c.h.b16 %v361
        %v696 = vunpack.c.l.b16 %v362
        %v697 = vunpack.c.h.b16 %v362
        %v698 = vunpack.c.l.b16 %v363
        %v699 = vunpack.c.h.b16 %v363
        %v700 = vunpack.c.l.b16 %v364
        %v701 = vunpack.c.h.b16 %v364
        %v702 = vunpack.c.l.b16 %v365
        %v703 = vunpack.c.h.b16 %v365
        %v704 = vunpack.c.l.b16 %v366
        %v705 = vunpack.c.h.b16 %v366
        %v706 = vunpack.c.l.b16 %v367
        %v707 = vunpack.c.h.b16 %v367
        %v708 = vunpack.c.l.b16 %v368
        %v709 = vunpack.c.h.b16 %v368
        %v710 = vunpack.c.l.b16 %v369
        %v711 = vunpack.c.h.b16 %v369
        %v712 = vunpack.c.l.b16 %v370
        %v713 = vunpack.c.h.b16 %v370
        %v714 = vunpack.c.l.b16 %v371
        %v715 = vunpack.c.h.b16 %v371
        %v716 = vunpack.c.l.b16 %v372
        %v717 = vunpack.c.h.b16 %v372
        %v718 = vunpack.c.l.b16 %v373
        %v719 = vunpack.c.h.b16 %v373
        %v720 = vunpack.c.l.b16 %v374
        %v721 = vunpack.c.h.b16 %v374
        %v722 = vunpack.c.l.b16 %v375
        %v723 = vunpack.c.h.b16 %v375
        %v724 = vunpack.c.l.b16 %v376
        %v725 = vunpack.c.h.b16 %v376
        %v726 = vunpack.c.l.b16 %v377
        %v727 = vunpack.c.h.b16 %v377
        %v728 = vunpack.c.l.b16 %v378
        %v729 = vunpack.c.h.b16 %v378
        %v730 = vunpack.c.l.b16 %v379
        %v731 = vunpack.c.h.b16 %v379
        %v732 = vunpack.c.l.b16 %v380
        %v733 = vunpack.c.h.b16 %v380
        %v734 = vunpack.c.l.b16 %v381
        %v735 = vunpack.c.h.b16 %v381
        %v736 = vunpack.c.l.b16 %v382
        %v737 = vunpack.c.h.b16 %v382
        %v738 = vunpack.c.l.b16 %v383
        %v739 = vunpack.c.h.b16 %v383
        %v740 = vunpack.c.l.b16 %v384
        %v741 = vunpack.c.h.b16 %v384
        %v742 = vunpack.c.l.b16 %v385
        %v743 = vunpack.c.h.b16 %v385
        %v744 = vunpack.c.l.b16 %v386
        %v745 = vunpack.c.h.b16 %v386
        %v746 = vunpack.c.l.b16 %v387
        %v747 = vunpack.c.h.b16 %v387
        %v748 = vunpack.c.l.b16 %v388
        %v749 = vunpack.c.h.b16 %v388
        %v750 = vunpack.c.l.b16 %v389
        %v751 = vunpack.c.h.b16 %v389
        %v752 = vunpack.c.l.b16 %v390
        %v753 = vunpack.c.h.b16 %v390
        %v754 = vunpack.c.l.b16 %v391
        %v755 = vunpack.c.h.b16 %v391
        %v756 = vunpack.c.l.b16 %v392
        %v757 = vunpack.c.h.b16 %v392
        %v758 = vunpack.c.l.b16 %v393
        %v759 = vunpack.c.h.b16 %v393
        %v760 = vunpack.c.l.b16 %v394
        %v761 = vunpack.c.h.b16 %v394
        %v762 = vunpack.c.l.b16 %v395
        %v763 = vunpack.c.h.b16 %v395
        %v764 = vunpack.c.l.b16 %v396
        %v765 = vunpack.c.h.b16 %v396
        %v766 = vunpack.c.l.b16 %v397
        %v767 = vunpack.c.h.b16 %v397
        %v768 = vunpack.c.l.b16 %v398
        %v769 = vunpack.c.h.b16 %v398
        %v770 = vunpack.c.l.b16 %v399
        %v771 = vunpack.c.h.b16 %v399
        %v772 = vunpack.c.l.b16 %v400
        %v773 = vunpack.c.h.b16 %v400
        %v774 = vunpack.c.l.b16 %v401
        %v775 = vunpack.c.h.b16 %v401
        %v776 = vunpack.c.l.b16 %v402
        %v777 = vunpack.c.h.b16 %v402
        %v778 = vunpack.c.l.b16 %v403
        %v779 = vunpack.c.h.b16 %v403
        %v780 = vunpack.c.l.b16 %v404
        %v781 = vunpack.c.h.b16 %v404
        %v782 = vunpack.c.l.b16 %v405
        %v783 = vunpack.c.h.b16 %v405
        %v784 = vunpack.c.l.b16 %v406
        %v785 = vunpack.c.h.b16 %v406
        %v786 = vunpack.c.l.b16 %v407
        %v787 = vunpack.c.h.b16 %v407
        %v788 = vunpack.c.l.b16 %v408
        %v789 = vunpack.c.h.b16 %v408
        %v790 = vunpack.c.l.b16 %v409
        %v791 = vunpack.c.h.b16 %v409
        %v792 = vunpack.c.l.b16 %v410
        %v793 = vunpack.c.h.b16 %v410
        %v794 = vunpack.c.l.b16 %v411
        %v795 = vunpack.c.h.b16 %v411
        %v796 = vunpack.c.l.b16 %v412
        %v797 = vunpack.c.h.b16 %v412
        %v798 = vunpack.c.l.b16 %v413
        %v799 = vunpack.c.h.b16 %v413
        %v800 = vunpack.c.l.b16 %v414
        %v801 = vunpack.c.h.b16 %v414
        %v802 = vunpack.c.l.b16 %v415
        %v803 = vunpack.c.h.b16 %v415
        %v804 = vunpack.c.l.b16 %v416
        %v805 = vunpack.c.h.b16 %v416
        %v806 = vunpack.c.l.b16 %v417
        %v807 = vunpack.c.h.b16 %v417
        %v808 = vunpack.c.l.b16 %v418
        %v809 = vunpack.c.h.b16 %v418
        %v810 = vunpack.c.l.b16 %v419
        %v811 = vunpack.c.h.b16 %v419
        %v812 = vunpack.c.l.b16 %v420
        %v813 = vunpack.c.h.b16 %v420
        %v814 = vunpack.c.l.b16 %v421
        %v815 = vunpack.c.h.b16 %v421
        %v816 = vunpack.c.l.b16 %v422
        %v817 = vunpack.c.h.b16 %v422
        %v818 = vunpack.c.l.b16 %v423
        %v819 = vunpack.c.h.b16 %v423
        %v820 = vunpack.c.l.b16 %v424
        %v821 = vunpack.c.h.b16 %v424
        %v822 = vunpack.c.l.b16 %v425
        %v823 = vunpack.c.h.b16 %v425
        %v824 = vunpack.c.l.b16 %v426
        %v825 = vunpack.c.h.b16 %v426
        %v826 = vunpack.c.l.b16 %v427
        %v827 = vunpack.c.h.b16 %v427
        %v828 = vunpack.c.l.b16 %v428
        %v829 = vunpack.c.h.b16 %v428
        %v830 = vunpack.c.l.b16 %v429
        %v831 = vunpack.c.h.b16 %v429
        %v832 = vpack.c.b16 %v584, %v576
        %v833 = vpack.c.b16 %v585, %v577
        %v834 = vpack.c.b16 %v586, %v578
        %v835 = vpack.c.b16 %v587, %v579
        %v836 = vpack.c.b16 %v588, %v580
        %v837 = vpack.c.b16 %v589, %v581
        %v838 = vpack.c.b16 %v590, %v582
        %v839 = vpack.c.b16 %v591, %v583
        %v840 = vpack.c.b16 %v600, %v592
        %v841 = vpack.c.b16 %v601, %v593
        %v842 = vpack.c.b16 %v602, %v594
        %v843 = vpack.c.b16 %v603, %v595
        %v844 = vpack.c.b16 %v604, %v596
        %v845 = vpack.c.b16 %v605, %v597
        %v846 = vpack.c.b16 %v606, %v598
        %v847 = vpack.c.b16 %v607, %v599
        %v848 = vpack.c.b16 %v616, %v608
        %v849 = vpack.c.b16 %v617, %v609
        %v850 = vpack.c.b16 %v618, %v610
        %v851 = vpack.c.b16 %v619, %v611
        %v852 = vpack.c.b16 %v620, %v612
        %v853 = vpack.c.b16 %v621, %v613
        %v854 = vpack.c.b16 %v622, %v614
        %v855 = vpack.c.b16 %v623, %v615
        %v856 = vpack.c.b16 %v632, %v624
        %v857 = vpack.c.b16 %v633, %v625
        %v858 = vpack.c.b16 %v634, %v626
        %v859 = vpack.c.b16 %v635, %v627
        %v860 = vpack.c.b16 %v636, %v628
        %v861 = vpack.c.b16 %v637, %v629
        %v862 = vpack.c.b16 %v638, %v630
        %v863 = vpack.c.b16 %v639, %v631
        %v864 = vpack.c.b16 %v648, %v640
        %v865 = vpack.c.b16 %v649, %v641
        %v866 = vpack.c.b16 %v650, %v642
        %v867 = vpack.c.b16 %v651, %v643
        %v868 = vpack.c.b16 %v652, %v644
        %v869 = vpack.c.b16 %v653, %v645
        %v870 = vpack.c.b16 %v654, %v646
        %v871 = vpack.c.b16 %v655, %v647
        %v872 = vpack.c.b16 %v664, %v656
        %v873 = vpack.c.b16 %v665, %v657
        %v874 = vpack.c.b16 %v666, %v658
        %v875 = vpack.c.b16 %v667, %v659
        %v876 = vpack.c.b16 %v668, %v660
        %v877 = vpack.c.b16 %v669, %v661
        %v878 = vpack.c.b16 %v670, %v662
        %v879 = vpack.c.b16 %v671, %v663
        %v880 = vpack.c.b16 %v680, %v672
        %v881 = vpack.c.b16 %v681, %v673
        %v882 = vpack.c.b16 %v682, %v674
        %v883 = vpack.c.b16 %v683, %v675
        %v884 = vpack.c.b16 %v684, %v676
        %v885 = vpack.c.b16 %v685, %v677
        %v886 = vpack.c.b16 %v686, %v678
        %v887 = vpack.c.b16 %v687, %v679
        %v888 = vpack.c.b16 %v696, %v688
        %v889 = vpack.c.b16 %v697, %v689
        %v890 = vpack.c.b16 %v698, %v690
        %v891 = vpack.c.b16 %v699, %v691
        %v892 = vpack.c.b16 %v700, %v692
        %v893 = vpack.c.b16 %v701, %v693
        %v894 = vpack.c.b16 %v702, %v694
        %v895 = vpack.c.b16 %v703, %v695
        %v896 = vpack.c.b16 %v712, %v704
        %v897 = vpack.c.b16 %v713, %v705
        %v898 = vpack.c.b16 %v714, %v706
        %v899 = vpack.c.b16 %v715, %v707
        %v900 = vpack.c.b16 %v716, %v708
        %v901 = vpack.c.b16 %v717, %v709
        %v902 = vpack.c.b16 %v718, %v710
        %v903 = vpack.c.b16 %v719, %v711
        %v904 = vpack.c.b16 %v728, %v720
        %v905 = vpack.c.b16 %v729, %v721
        %v906 = vpack.c.b16 %v730, %v722
        %v907 = vpack.c.b16 %v731, %v723
        %v908 = vpack.c.b16 %v732, %v724
        %v909 = vpack.c.b16 %v733, %v725
        %v910 = vpack.c.b16 %v734, %v726
        %v911 = vpack.c.b16 %v735, %v727
        %v912 = vpack.c.b16 %v744, %v736
        %v913 = vpack.c.b16 %v745, %v737
        %v914 = vpack.c.b16 %v746, %v738
        %v915 = vpack.c.b16 %v747, %v739
        %v916 = vpack.c.b16 %v748, %v740
        %v917 = vpack.c.b16 %v749, %v741
        %v918 = vpack.c.b16 %v750, %v742
        %v919 = vpack.c.b16 %v751, %v743
        %v920 = vpack.c.b16 %v760, %v752
        %v921 = vpack.c.b16 %v761, %v753
        %v922 = vpack.c.b16 %v762, %v754
        %v923 = vpack.c.b16 %v763, %v755
        %v924 = vpack.c.b16 %v764, %v756
        %v925 = vpack.c.b16 %v765, %v757
        %v926 = vpack.c.b16 %v766, %v758
        %v927 = vpack.c.b16 %v767, %v759
        %v928 = vpack.c.b16 %v776, %v768
        %v929 = vpack.c.b16 %v777, %v769
        %v930 = vpack.c.b16 %v778, %v770
        %v931 = vpack.c.b16 %v779, %v771
        %v932 = vpack.c.b16 %v780, %v772
        %v933 = vpack.c.b16 %v781, %v773
        %v934 = vpack.c.b16 %v782, %v774
        %v935 = vpack.c.b16 %v783, %v775
        %v936 = vpack.c.b16 %v792, %v784
        %v937 = vpack.c.b16 %v793, %v785
        %v938 = vpack.c.b16 %v794, %v786
        %v939 = vpack.c.b16 %v795, %v787
        %v940 = vpack.c.b16 %v796, %v788
        %v941 = vpack.c.b16 %v797, %v789
        %v942 = vpack.c.b16 %v798, %v790
        %v943 = vpack.c.b16 %v799, %v791
        %v944 = vpack.c.b16 %v808, %v800
        %v945 = vpack.c.b16 %v809, %v801
        %v946 = vpack.c.b16 %v810, %v802
        %v947 = vpack.c.b16 %v811, %v803
        %v948 = vpack.c.b16 %v812, %v804
        %v949 = vpack.c.b16 %v813, %v805
        %v950 = vpack.c.b16 %v814, %v806
        %v951 = vpack.c.b16 %v815, %v807
        %v952 = vpack.c.b16 %v824, %v816
        %v953 = vpack.c.b16 %v825, %v817
        %v954 = vpack.c.b16 %v826, %v818
        %v955 = vpack.c.b16 %v827, %v819
        %v956 = vpack.c.b16 %v828, %v820
        %v957 = vpack.c.b16 %v829, %v821
        %v958 = vpack.c.b16 %v830, %v822
        %v959 = vpack.c.b16 %v831, %v823
        %1088 = vmatpush.bf16.msra.mxu0 %v888
        %1089 = vmatpush.bf16.msra.mxu0 %v880
        %1090 = vmatpush.bf16.msra.mxu0 %v872
        %1091 = vmatpush.bf16.msra.mxu0 %v864
        %1092 = vmatpush.bf16.msra.mxu0 %v856
        %1093 = vmatpush.bf16.msra.mxu0 %v848
        %1094 = vmatpush.bf16.msra.mxu0 %v840
        %1095 = vmatpush.bf16.msra.mxu0 %v832
        %1096 = vmatmul.bf16.gmra.mxu0 %v300
        %v1097 = vpop.f32.mrf.mxu0
        %v1098 = vadd.f32 %v432, %v1097
        %v1099 = vpop.f32.mrf.mxu0
        %v1100 = vadd.f32 %v432, %v1099
        %1101 = vdwg.mxu0
        %1102 = vmatpush.bf16.msra.mxu0 %v952
        %1103 = vmatpush.bf16.msra.mxu0 %v944
        %1104 = vmatpush.bf16.msra.mxu0 %v936
        %1105 = vmatpush.bf16.msra.mxu0 %v928
        %1106 = vmatpush.bf16.msra.mxu0 %v920
        %1107 = vmatpush.bf16.msra.mxu0 %v912
        %1108 = vmatpush.bf16.msra.mxu0 %v904
        %1109 = vmatpush.bf16.msra.mxu0 %v896
        %1110 = vmatmul.bf16.gmra.mxu0 %v301
        %v1111 = vpop.f32.mrf.mxu0
        %v1112 = vadd.f32 %v1098, %v1111
        %v1113 = vpop.f32.mrf.mxu0
        %v1114 = vadd.f32 %v1100, %v1113
        %1115 = vdwg.mxu0
        %1116 = vmatpush.bf16.msra.mxu0 %v889
        %1117 = vmatpush.bf16.msra.mxu0 %v881
        %1118 = vmatpush.bf16.msra.mxu0 %v873
        %1119 = vmatpush.bf16.msra.mxu0 %v865
        %1120 = vmatpush.bf16.msra.mxu0 %v857
        %1121 = vmatpush.bf16.msra.mxu0 %v849
        %1122 = vmatpush.bf16.msra.mxu0 %v841
        %1123 = vmatpush.bf16.msra.mxu0 %v833
        %1124 = vmatmul.bf16.gmra.mxu0 %v300
        %v1125 = vpop.f32.mrf.mxu0
        %v1126 = vadd.f32 %v433, %v1125
        %v1127 = vpop.f32.mrf.mxu0
        %v1128 = vadd.f32 %v433, %v1127
        %1129 = vdwg.mxu0
        %1130 = vmatpush.bf16.msra.mxu0 %v953
        %1131 = vmatpush.bf16.msra.mxu0 %v945
        %1132 = vmatpush.bf16.msra.mxu0 %v937
        %1133 = vmatpush.bf16.msra.mxu0 %v929
        %1134 = vmatpush.bf16.msra.mxu0 %v921
        %1135 = vmatpush.bf16.msra.mxu0 %v913
        %1136 = vmatpush.bf16.msra.mxu0 %v905
        %1137 = vmatpush.bf16.msra.mxu0 %v897
        %1138 = vmatmul.bf16.gmra.mxu0 %v301
        %v1139 = vpop.f32.mrf.mxu0
        %v1140 = vadd.f32 %v1126, %v1139
        %v1141 = vpop.f32.mrf.mxu0
        %v1142 = vadd.f32 %v1128, %v1141
        %1143 = vdwg.mxu0
        %1144 = vmatpush.bf16.msra.mxu0 %v890
        %1145 = vmatpush.bf16.msra.mxu0 %v882
        %1146 = vmatpush.bf16.msra.mxu0 %v874
        %1147 = vmatpush.bf16.msra.mxu0 %v866
        %1148 = vmatpush.bf16.msra.mxu0 %v858
        %1149 = vmatpush.bf16.msra.mxu0 %v850
        %1150 = vmatpush.bf16.msra.mxu0 %v842
        %1151 = vmatpush.bf16.msra.mxu0 %v834
        %1152 = vmatmul.bf16.gmra.mxu0 %v300
        %v1153 = vpop.f32.mrf.mxu0
        %v1154 = vadd.f32 %v434, %v1153
        %v1155 = vpop.f32.mrf.mxu0
        %v1156 = vadd.f32 %v434, %v1155
        %1157 = vdwg.mxu0
        %1158 = vmatpush.bf16.msra.mxu0 %v954
        %1159 = vmatpush.bf16.msra.mxu0 %v946
        %1160 = vmatpush.bf16.msra.mxu0 %v938
        %1161 = vmatpush.bf16.msra.mxu0 %v930
        %1162 = vmatpush.bf16.msra.mxu0 %v922
        %1163 = vmatpush.bf16.msra.mxu0 %v914
        %1164 = vmatpush.bf16.msra.mxu0 %v906
        %1165 = vmatpush.bf16.msra.mxu0 %v898
        %1166 = vmatmul.bf16.gmra.mxu0 %v301
        %v1167 = vpop.f32.mrf.mxu0
        %v1168 = vadd.f32 %v1154, %v1167
        %v1169 = vpop.f32.mrf.mxu0
        %v1170 = vadd.f32 %v1156, %v1169
        %1171 = vdwg.mxu0
        %1172 = vmatpush.bf16.msra.mxu0 %v891
        %1173 = vmatpush.bf16.msra.mxu0 %v883
        %1174 = vmatpush.bf16.msra.mxu0 %v875
        %1175 = vmatpush.bf16.msra.mxu0 %v867
        %1176 = vmatpush.bf16.msra.mxu0 %v859
        %1177 = vmatpush.bf16.msra.mxu0 %v851
        %1178 = vmatpush.bf16.msra.mxu0 %v843
        %1179 = vmatpush.bf16.msra.mxu0 %v835
        %1180 = vmatmul.bf16.gmra.mxu0 %v300
        %v1181 = vpop.f32.mrf.mxu0
        %v1182 = vadd.f32 %v435, %v1181
        %v1183 = vpop.f32.mrf.mxu0
        %v1184 = vadd.f32 %v435, %v1183
        %1185 = vdwg.mxu0
        %1186 = vmatpush.bf16.msra.mxu0 %v955
        %1187 = vmatpush.bf16.msra.mxu0 %v947
        %1188 = vmatpush.bf16.msra.mxu0 %v939
        %1189 = vmatpush.bf16.msra.mxu0 %v931
        %1190 = vmatpush.bf16.msra.mxu0 %v923
        %1191 = vmatpush.bf16.msra.mxu0 %v915
        %1192 = vmatpush.bf16.msra.mxu0 %v907
        %1193 = vmatpush.bf16.msra.mxu0 %v899
        %1194 = vmatmul.bf16.gmra.mxu0 %v301
        %v1195 = vpop.f32.mrf.mxu0
        %v1196 = vadd.f32 %v1182, %v1195
        %v1197 = vpop.f32.mrf.mxu0
        %v1198 = vadd.f32 %v1184, %v1197
        %1199 = vdwg.mxu0
        %1200 = vmatpush.bf16.msra.mxu0 %v892
        %1201 = vmatpush.bf16.msra.mxu0 %v884
        %1202 = vmatpush.bf16.msra.mxu0 %v876
        %1203 = vmatpush.bf16.msra.mxu0 %v868
        %1204 = vmatpush.bf16.msra.mxu0 %v860
        %1205 = vmatpush.bf16.msra.mxu0 %v852
        %1206 = vmatpush.bf16.msra.mxu0 %v844
        %1207 = vmatpush.bf16.msra.mxu0 %v836
        %1208 = vmatmul.bf16.gmra.mxu0 %v300
        %v1209 = vpop.f32.mrf.mxu0
        %v1210 = vadd.f32 %v436, %v1209
        %v1211 = vpop.f32.mrf.mxu0
        %v1212 = vadd.f32 %v436, %v1211
        %1213 = vdwg.mxu0
        %1214 = vmatpush.bf16.msra.mxu0 %v956
        %1215 = vmatpush.bf16.msra.mxu0 %v948
        %1216 = vmatpush.bf16.msra.mxu0 %v940
        %1217 = vmatpush.bf16.msra.mxu0 %v932
        %1218 = vmatpush.bf16.msra.mxu0 %v924
        %1219 = vmatpush.bf16.msra.mxu0 %v916
        %1220 = vmatpush.bf16.msra.mxu0 %v908
        %1221 = vmatpush.bf16.msra.mxu0 %v900
        %1222 = vmatmul.bf16.gmra.mxu0 %v301
        %v1223 = vpop.f32.mrf.mxu0
        %v1224 = vadd.f32 %v1210, %v1223
        %v1225 = vpop.f32.mrf.mxu0
        %v1226 = vadd.f32 %v1212, %v1225
        %1227 = vdwg.mxu0
        %1228 = vmatpush.bf16.msra.mxu0 %v893
        %1229 = vmatpush.bf16.msra.mxu0 %v885
        %1230 = vmatpush.bf16.msra.mxu0 %v877
        %1231 = vmatpush.bf16.msra.mxu0 %v869
        %1232 = vmatpush.bf16.msra.mxu0 %v861
        %1233 = vmatpush.bf16.msra.mxu0 %v853
        %1234 = vmatpush.bf16.msra.mxu0 %v845
        %1235 = vmatpush.bf16.msra.mxu0 %v837
        %1236 = vmatmul.bf16.gmra.mxu0 %v300
        %v1237 = vpop.f32.mrf.mxu0
        %v1238 = vadd.f32 %v437, %v1237
        %v1239 = vpop.f32.mrf.mxu0
        %v1240 = vadd.f32 %v437, %v1239
        %1241 = vdwg.mxu0
        %1242 = vmatpush.bf16.msra.mxu0 %v957
        %1243 = vmatpush.bf16.msra.mxu0 %v949
        %1244 = vmatpush.bf16.msra.mxu0 %v941
        %1245 = vmatpush.bf16.msra.mxu0 %v933
        %1246 = vmatpush.bf16.msra.mxu0 %v925
        %1247 = vmatpush.bf16.msra.mxu0 %v917
        %1248 = vmatpush.bf16.msra.mxu0 %v909
        %1249 = vmatpush.bf16.msra.mxu0 %v901
        %1250 = vmatmul.bf16.gmra.mxu0 %v301
        %v1251 = vpop.f32.mrf.mxu0
        %v1252 = vadd.f32 %v1238, %v1251
        %v1253 = vpop.f32.mrf.mxu0
        %v1254 = vadd.f32 %v1240, %v1253
        %1255 = vdwg.mxu0
        %1256 = vmatpush.bf16.msra.mxu0 %v894
        %1257 = vmatpush.bf16.msra.mxu0 %v886
        %1258 = vmatpush.bf16.msra.mxu0 %v878
        %1259 = vmatpush.bf16.msra.mxu0 %v870
        %1260 = vmatpush.bf16.msra.mxu0 %v862
        %1261 = vmatpush.bf16.msra.mxu0 %v854
        %1262 = vmatpush.bf16.msra.mxu0 %v846
        %1263 = vmatpush.bf16.msra.mxu0 %v838
        %1264 = vmatmul.bf16.gmra.mxu0 %v300
        %v1265 = vpop.f32.mrf.mxu0
        %v1266 = vadd.f32 %v438, %v1265
        %v1267 = vpop.f32.mrf.mxu0
        %v1268 = vadd.f32 %v438, %v1267
        %1269 = vdwg.mxu0
        %1270 = vmatpush.bf16.msra.mxu0 %v958
        %1271 = vmatpush.bf16.msra.mxu0 %v950
        %1272 = vmatpush.bf16.msra.mxu0 %v942
        %1273 = vmatpush.bf16.msra.mxu0 %v934
        %1274 = vmatpush.bf16.msra.mxu0 %v926
        %1275 = vmatpush.bf16.msra.mxu0 %v918
        %1276 = vmatpush.bf16.msra.mxu0 %v910
        %1277 = vmatpush.bf16.msra.mxu0 %v902
        %1278 = vmatmul.bf16.gmra.mxu0 %v301
        %v1279 = vpop.f32.mrf.mxu0
        %v1280 = vadd.f32 %v1266, %v1279
        %v1281 = vpop.f32.mrf.mxu0
        %v1282 = vadd.f32 %v1268, %v1281
        %1283 = vdwg.mxu0
        %1284 = vmatpush.bf16.msra.mxu0 %v895
        %1285 = vmatpush.bf16.msra.mxu0 %v887
        %1286 = vmatpush.bf16.msra.mxu0 %v879
        %1287 = vmatpush.bf16.msra.mxu0 %v871
        %1288 = vmatpush.bf16.msra.mxu0 %v863
        %1289 = vmatpush.bf16.msra.mxu0 %v855
        %1290 = vmatpush.bf16.msra.mxu0 %v847
        %1291 = vmatpush.bf16.msra.mxu0 %v839
        %1292 = vmatmul.bf16.gmra.mxu0 %v300
        %v1293 = vpop.f32.mrf.mxu0
        %v1294 = vadd.f32 %v439, %v1293
        %v1295 = vpop.f32.mrf.mxu0
        %v1296 = vadd.f32 %v439, %v1295
        %1297 = vdwg.mxu0
        %1298 = vmatpush.bf16.msra.mxu0 %v959
        %1299 = vmatpush.bf16.msra.mxu0 %v951
        %1300 = vmatpush.bf16.msra.mxu0 %v943
        %1301 = vmatpush.bf16.msra.mxu0 %v935
        %1302 = vmatpush.bf16.msra.mxu0 %v927
        %1303 = vmatpush.bf16.msra.mxu0 %v919
        %1304 = vmatpush.bf16.msra.mxu0 %v911
        %1305 = vmatpush.bf16.msra.mxu0 %v903
        %1306 = vmatmul.bf16.gmra.mxu0 %v301
        %v1307 = vpop.f32.mrf.mxu0
        %v1308 = vadd.f32 %v1294, %v1307
        %v1309 = vpop.f32.mrf.mxu0
        %v1310 = vadd.f32 %v1296, %v1309
        %1311 = vdwg.mxu0
        %v1312 = vmax.f32 %v1112, 0.0
        %v1313 = vmax.f32 %v1140, 0.0
        %v1314 = vmax.f32 %v1168, 0.0
        %v1315 = vmax.f32 %v1196, 0.0
        %v1316 = vmax.f32 %v1224, 0.0
        %v1317 = vmax.f32 %v1252, 0.0
        %v1318 = vmax.f32 %v1280, 0.0
        %v1319 = vmax.f32 %v1308, 0.0
        %v1320 = vmax.f32 %v1114, 0.0
        %v1321 = vmax.f32 %v1142, 0.0
        %v1322 = vmax.f32 %v1170, 0.0
        %v1323 = vmax.f32 %v1198, 0.0
        %v1324 = vmax.f32 %v1226, 0.0
        %v1325 = vmax.f32 %v1254, 0.0
        %v1326 = vmax.f32 %v1282, 0.0
        %v1327 = vmax.f32 %v1310, 0.0
        %v1328 = vpack.c.bf16 %v1313, %v1312
        %v1329 = vpack.c.bf16 %v1315, %v1314
        %v1330 = vpack.c.bf16 %v1317, %v1316
        %v1331 = vpack.c.bf16 %v1319, %v1318
        %v1332 = vpack.c.bf16 %v1321, %v1320
        %v1333 = vpack.c.bf16 %v1323, %v1322
        %v1334 = vpack.c.bf16 %v1325, %v1324
        %v1335 = vpack.c.bf16 %v1327, %v1326
        %1336 = vst [vmem:[#allocation2] sm:$0xff] %v1328
        %1337 = vst [vmem:[#allocation2 + $0x8] sm:$0xff] %v1329
        %1338 = vst [vmem:[#allocation2 + $0x10] sm:$0xff] %v1330
        %1339 = vst [vmem:[#allocation2 + $0x18] sm:$0xff] %v1331
        %1340 = vst [vmem:[#allocation2 + $0x20] sm:$0xff] %v1332
        %1341 = vst [vmem:[#allocation2 + $0x28] sm:$0xff] %v1333
        %1342 = vst [vmem:[#allocation2 + $0x30] sm:$0xff] %v1334
        %1343 = vst [vmem:[#allocation2 + $0x38] sm:$0xff] %v1335
        %v1344 = vld [vmem:[#allocation2] sm:$0xff]
        %v1345 = vld [vmem:[#allocation2 + $0x8] sm:$0xff]
        %v1346 = vld [vmem:[#allocation2 + $0x10] sm:$0xff]
        %v1347 = vld [vmem:[#allocation2 + $0x18] sm:$0xff]
        %v1348 = vld [vmem:[#allocation2 + $0x20] sm:$0xff]
        %v1349 = vld [vmem:[#allocation2 + $0x28] sm:$0xff]
        %v1350 = vld [vmem:[#allocation2 + $0x30] sm:$0xff]
        %v1351 = vld [vmem:[#allocation2 + $0x38] sm:$0xff]
        %v1352 = vld [vmem:[#allocation9] sm:$0xff]
        %v1353 = vld [vmem:[#allocation9 + $0x8] sm:$0xff]
        %v1354 = vld [vmem:[#allocation9 + $0x10] sm:$0xff]
        %v1355 = vld [vmem:[#allocation9 + $0x18] sm:$0xff]
        %v1356 = vld [vmem:[#allocation9 + $0x20] sm:$0xff]
        %v1357 = vld [vmem:[#allocation9 + $0x28] sm:$0xff]
        %v1358 = vld [vmem:[#allocation9 + $0x30] sm:$0xff]
        %v1359 = vld [vmem:[#allocation9 + $0x38] sm:$0xff]
        %v1360 = vld [vmem:[#allocation9 + $0x40] sm:$0xff]
        %v1361 = vld [vmem:[#allocation9 + $0x48] sm:$0xff]
        %v1362 = vld [vmem:[#allocation9 + $0x50] sm:$0xff]
        %v1363 = vld [vmem:[#allocation9 + $0x58] sm:$0xff]
        %v1364 = vld [vmem:[#allocation9 + $0x60] sm:$0xff]
        %v1365 = vld [vmem:[#allocation9 + $0x68] sm:$0xff]
        %v1366 = vld [vmem:[#allocation9 + $0x70] sm:$0xff]
        %v1367 = vld [vmem:[#allocation9 + $0x78] sm:$0xff]
        %v1368 = vld [vmem:[#allocation9 + $0x80] sm:$0xff]
        %v1369 = vld [vmem:[#allocation9 + $0x88] sm:$0xff]
        %v1370 = vld [vmem:[#allocation9 + $0x90] sm:$0xff]
        %v1371 = vld [vmem:[#allocation9 + $0x98] sm:$0xff]
        %v1372 = vld [vmem:[#allocation9 + $0xa0] sm:$0xff]
        %v1373 = vld [vmem:[#allocation9 + $0xa8] sm:$0xff]
        %v1374 = vld [vmem:[#allocation9 + $0xb0] sm:$0xff]
        %v1375 = vld [vmem:[#allocation9 + $0xb8] sm:$0xff]
        %v1376 = vld [vmem:[#allocation9 + $0xc0] sm:$0xff]
        %v1377 = vld [vmem:[#allocation9 + $0xc8] sm:$0xff]
        %v1378 = vld [vmem:[#allocation9 + $0xd0] sm:$0xff]
        %v1379 = vld [vmem:[#allocation9 + $0xd8] sm:$0xff]
        %v1380 = vld [vmem:[#allocation9 + $0xe0] sm:$0xff]
        %v1381 = vld [vmem:[#allocation9 + $0xe8] sm:$0xff]
        %v1382 = vld [vmem:[#allocation9 + $0xf0] sm:$0xff]
        %v1383 = vld [vmem:[#allocation9 + $0xf8] sm:$0xff]
        %v1384 = vld [vmem:[#allocation9 + $0x100] sm:$0xff]
        %v1385 = vld [vmem:[#allocation9 + $0x108] sm:$0xff]
        %v1386 = vld [vmem:[#allocation9 + $0x110] sm:$0xff]
        %v1387 = vld [vmem:[#allocation9 + $0x118] sm:$0xff]
        %v1388 = vld [vmem:[#allocation9 + $0x120] sm:$0xff]
        %v1389 = vld [vmem:[#allocation9 + $0x128] sm:$0xff]
        %v1390 = vld [vmem:[#allocation9 + $0x130] sm:$0xff]
        %v1391 = vld [vmem:[#allocation9 + $0x138] sm:$0xff]
        %v1392 = vld [vmem:[#allocation9 + $0x140] sm:$0xff]
        %v1393 = vld [vmem:[#allocation9 + $0x148] sm:$0xff]
        %v1394 = vld [vmem:[#allocation9 + $0x150] sm:$0xff]
        %v1395 = vld [vmem:[#allocation9 + $0x158] sm:$0xff]
        %v1396 = vld [vmem:[#allocation9 + $0x160] sm:$0xff]
        %v1397 = vld [vmem:[#allocation9 + $0x168] sm:$0xff]
        %v1398 = vld [vmem:[#allocation9 + $0x170] sm:$0xff]
        %v1399 = vld [vmem:[#allocation9 + $0x178] sm:$0xff]
        %v1400 = vld [vmem:[#allocation9 + $0x180] sm:$0xff]
        %v1401 = vld [vmem:[#allocation9 + $0x188] sm:$0xff]
        %v1402 = vld [vmem:[#allocation9 + $0x190] sm:$0xff]
        %v1403 = vld [vmem:[#allocation9 + $0x198] sm:$0xff]
        %v1404 = vld [vmem:[#allocation9 + $0x1a0] sm:$0xff]
        %v1405 = vld [vmem:[#allocation9 + $0x1a8] sm:$0xff]
        %v1406 = vld [vmem:[#allocation9 + $0x1b0] sm:$0xff]
        %v1407 = vld [vmem:[#allocation9 + $0x1b8] sm:$0xff]
        %v1408 = vld [vmem:[#allocation9 + $0x1c0] sm:$0xff]
        %v1409 = vld [vmem:[#allocation9 + $0x1c8] sm:$0xff]
        %v1410 = vld [vmem:[#allocation9 + $0x1d0] sm:$0xff]
        %v1411 = vld [vmem:[#allocation9 + $0x1d8] sm:$0xff]
        %v1412 = vld [vmem:[#allocation9 + $0x1e0] sm:$0xff]
        %v1413 = vld [vmem:[#allocation9 + $0x1e8] sm:$0xff]
        %v1414 = vld [vmem:[#allocation9 + $0x1f0] sm:$0xff]
        %v1415 = vld [vmem:[#allocation9 + $0x1f8] sm:$0xff]
        %v1416 = vld [vmem:[#allocation9 + $0x200] sm:$0xff]
        %v1417 = vld [vmem:[#allocation9 + $0x208] sm:$0xff]
        %v1418 = vld [vmem:[#allocation9 + $0x210] sm:$0xff]
        %v1419 = vld [vmem:[#allocation9 + $0x218] sm:$0xff]
        %v1420 = vld [vmem:[#allocation9 + $0x220] sm:$0xff]
        %v1421 = vld [vmem:[#allocation9 + $0x228] sm:$0xff]
        %v1422 = vld [vmem:[#allocation9 + $0x230] sm:$0xff]
        %v1423 = vld [vmem:[#allocation9 + $0x238] sm:$0xff]
        %v1424 = vld [vmem:[#allocation9 + $0x240] sm:$0xff]
        %v1425 = vld [vmem:[#allocation9 + $0x248] sm:$0xff]
        %v1426 = vld [vmem:[#allocation9 + $0x250] sm:$0xff]
        %v1427 = vld [vmem:[#allocation9 + $0x258] sm:$0xff]
        %v1428 = vld [vmem:[#allocation9 + $0x260] sm:$0xff]
        %v1429 = vld [vmem:[#allocation9 + $0x268] sm:$0xff]
        %v1430 = vld [vmem:[#allocation9 + $0x270] sm:$0xff]
        %v1431 = vld [vmem:[#allocation9 + $0x278] sm:$0xff]
        %v1432 = vld [vmem:[#allocation9 + $0x280] sm:$0xff]
        %v1433 = vld [vmem:[#allocation9 + $0x288] sm:$0xff]
        %v1434 = vld [vmem:[#allocation9 + $0x290] sm:$0xff]
        %v1435 = vld [vmem:[#allocation9 + $0x298] sm:$0xff]
        %v1436 = vld [vmem:[#allocation9 + $0x2a0] sm:$0xff]
        %v1437 = vld [vmem:[#allocation9 + $0x2a8] sm:$0xff]
        %v1438 = vld [vmem:[#allocation9 + $0x2b0] sm:$0xff]
        %v1439 = vld [vmem:[#allocation9 + $0x2b8] sm:$0xff]
        %v1440 = vld [vmem:[#allocation9 + $0x2c0] sm:$0xff]
        %v1441 = vld [vmem:[#allocation9 + $0x2c8] sm:$0xff]
        %v1442 = vld [vmem:[#allocation9 + $0x2d0] sm:$0xff]
        %v1443 = vld [vmem:[#allocation9 + $0x2d8] sm:$0xff]
        %v1444 = vld [vmem:[#allocation9 + $0x2e0] sm:$0xff]
        %v1445 = vld [vmem:[#allocation9 + $0x2e8] sm:$0xff]
        %v1446 = vld [vmem:[#allocation9 + $0x2f0] sm:$0xff]
        %v1447 = vld [vmem:[#allocation9 + $0x2f8] sm:$0xff]
        %v1448 = vld [vmem:[#allocation9 + $0x300] sm:$0xff]
        %v1449 = vld [vmem:[#allocation9 + $0x308] sm:$0xff]
        %v1450 = vld [vmem:[#allocation9 + $0x310] sm:$0xff]
        %v1451 = vld [vmem:[#allocation9 + $0x318] sm:$0xff]
        %v1452 = vld [vmem:[#allocation9 + $0x320] sm:$0xff]
        %v1453 = vld [vmem:[#allocation9 + $0x328] sm:$0xff]
        %v1454 = vld [vmem:[#allocation9 + $0x330] sm:$0xff]
        %v1455 = vld [vmem:[#allocation9 + $0x338] sm:$0xff]
        %v1456 = vld [vmem:[#allocation9 + $0x340] sm:$0xff]
        %v1457 = vld [vmem:[#allocation9 + $0x348] sm:$0xff]
        %v1458 = vld [vmem:[#allocation9 + $0x350] sm:$0xff]
        %v1459 = vld [vmem:[#allocation9 + $0x358] sm:$0xff]
        %v1460 = vld [vmem:[#allocation9 + $0x360] sm:$0xff]
        %v1461 = vld [vmem:[#allocation9 + $0x368] sm:$0xff]
        %v1462 = vld [vmem:[#allocation9 + $0x370] sm:$0xff]
        %v1463 = vld [vmem:[#allocation9 + $0x378] sm:$0xff]
        %v1464 = vld [vmem:[#allocation9 + $0x380] sm:$0xff]
        %v1465 = vld [vmem:[#allocation9 + $0x388] sm:$0xff]
        %v1466 = vld [vmem:[#allocation9 + $0x390] sm:$0xff]
        %v1467 = vld [vmem:[#allocation9 + $0x398] sm:$0xff]
        %v1468 = vld [vmem:[#allocation9 + $0x3a0] sm:$0xff]
        %v1469 = vld [vmem:[#allocation9 + $0x3a8] sm:$0xff]
        %v1470 = vld [vmem:[#allocation9 + $0x3b0] sm:$0xff]
        %v1471 = vld [vmem:[#allocation9 + $0x3b8] sm:$0xff]
        %v1472 = vld [vmem:[#allocation9 + $0x3c0] sm:$0xff]
        %v1473 = vld [vmem:[#allocation9 + $0x3c8] sm:$0xff]
        %v1474 = vld [vmem:[#allocation9 + $0x3d0] sm:$0xff]
        %v1475 = vld [vmem:[#allocation9 + $0x3d8] sm:$0xff]
        %v1476 = vld [vmem:[#allocation9 + $0x3e0] sm:$0xff]
        %v1477 = vld [vmem:[#allocation9 + $0x3e8] sm:$0xff]
        %v1478 = vld [vmem:[#allocation9 + $0x3f0] sm:$0xff]
        %v1479 = vld [vmem:[#allocation9 + $0x3f8] sm:$0xff]
        %v1480 = vld [vmem:[%s4] sm:$0x3]
        %v1482 = vperm.slane %v1480, 0
        %v1483 = vperm.slane %v1480, 1
        %v1494 = vunpack.c.l.b16 %v1344
        %v1495 = vunpack.c.h.b16 %v1344
        %v1496 = vunpack.c.l.b16 %v1345
        %v1497 = vunpack.c.h.b16 %v1345
        %v1498 = vunpack.c.l.b16 %v1346
        %v1499 = vunpack.c.h.b16 %v1346
        %v1500 = vunpack.c.l.b16 %v1347
        %v1501 = vunpack.c.h.b16 %v1347
        %v1502 = vunpack.c.l.b16 %v1348
        %v1503 = vunpack.c.h.b16 %v1348
        %v1504 = vunpack.c.l.b16 %v1349
        %v1505 = vunpack.c.h.b16 %v1349
        %v1506 = vunpack.c.l.b16 %v1350
        %v1507 = vunpack.c.h.b16 %v1350
        %v1508 = vunpack.c.l.b16 %v1351
        %v1509 = vunpack.c.h.b16 %v1351
        %v1510 = vpack.c.b16 %v1502, %v1494
        %v1511 = vpack.c.b16 %v1503, %v1495
        %v1512 = vpack.c.b16 %v1504, %v1496
        %v1513 = vpack.c.b16 %v1505, %v1497
        %v1514 = vpack.c.b16 %v1506, %v1498
        %v1515 = vpack.c.b16 %v1507, %v1499
        %v1516 = vpack.c.b16 %v1508, %v1500
        %v1517 = vpack.c.b16 %v1509, %v1501
        %v1654 = vunpack.c.l.b16 %v1352
        %v1655 = vunpack.c.h.b16 %v1352
        %v1656 = vunpack.c.l.b16 %v1353
        %v1657 = vunpack.c.h.b16 %v1353
        %v1658 = vunpack.c.l.b16 %v1354
        %v1659 = vunpack.c.h.b16 %v1354
        %v1660 = vunpack.c.l.b16 %v1355
        %v1661 = vunpack.c.h.b16 %v1355
        %v1662 = vunpack.c.l.b16 %v1356
        %v1663 = vunpack.c.h.b16 %v1356
        %v1664 = vunpack.c.l.b16 %v1357
        %v1665 = vunpack.c.h.b16 %v1357
        %v1666 = vunpack.c.l.b16 %v1358
        %v1667 = vunpack.c.h.b16 %v1358
        %v1668 = vunpack.c.l.b16 %v1359
        %v1669 = vunpack.c.h.b16 %v1359
        %v1670 = vunpack.c.l.b16 %v1360
        %v1671 = vunpack.c.h.b16 %v1360
        %v1672 = vunpack.c.l.b16 %v1361
        %v1673 = vunpack.c.h.b16 %v1361
        %v1674 = vunpack.c.l.b16 %v1362
        %v1675 = vunpack.c.h.b16 %v1362
        %v1676 = vunpack.c.l.b16 %v1363
        %v1677 = vunpack.c.h.b16 %v1363
        %v1678 = vunpack.c.l.b16 %v1364
        %v1679 = vunpack.c.h.b16 %v1364
        %v1680 = vunpack.c.l.b16 %v1365
        %v1681 = vunpack.c.h.b16 %v1365
        %v1682 = vunpack.c.l.b16 %v1366
        %v1683 = vunpack.c.h.b16 %v1366
        %v1684 = vunpack.c.l.b16 %v1367
        %v1685 = vunpack.c.h.b16 %v1367
        %v1686 = vunpack.c.l.b16 %v1368
        %v1687 = vunpack.c.h.b16 %v1368
        %v1688 = vunpack.c.l.b16 %v1369
        %v1689 = vunpack.c.h.b16 %v1369
        %v1690 = vunpack.c.l.b16 %v1370
        %v1691 = vunpack.c.h.b16 %v1370
        %v1692 = vunpack.c.l.b16 %v1371
        %v1693 = vunpack.c.h.b16 %v1371
        %v1694 = vunpack.c.l.b16 %v1372
        %v1695 = vunpack.c.h.b16 %v1372
        %v1696 = vunpack.c.l.b16 %v1373
        %v1697 = vunpack.c.h.b16 %v1373
        %v1698 = vunpack.c.l.b16 %v1374
        %v1699 = vunpack.c.h.b16 %v1374
        %v1700 = vunpack.c.l.b16 %v1375
        %v1701 = vunpack.c.h.b16 %v1375
        %v1702 = vunpack.c.l.b16 %v1376
        %v1703 = vunpack.c.h.b16 %v1376
        %v1704 = vunpack.c.l.b16 %v1377
        %v1705 = vunpack.c.h.b16 %v1377
        %v1706 = vunpack.c.l.b16 %v1378
        %v1707 = vunpack.c.h.b16 %v1378
        %v1708 = vunpack.c.l.b16 %v1379
        %v1709 = vunpack.c.h.b16 %v1379
        %v1710 = vunpack.c.l.b16 %v1380
        %v1711 = vunpack.c.h.b16 %v1380
        %v1712 = vunpack.c.l.b16 %v1381
        %v1713 = vunpack.c.h.b16 %v1381
        %v1714 = vunpack.c.l.b16 %v1382
        %v1715 = vunpack.c.h.b16 %v1382
        %v1716 = vunpack.c.l.b16 %v1383
        %v1717 = vunpack.c.h.b16 %v1383
        %v1718 = vunpack.c.l.b16 %v1384
        %v1719 = vunpack.c.h.b16 %v1384
        %v1720 = vunpack.c.l.b16 %v1385
        %v1721 = vunpack.c.h.b16 %v1385
        %v1722 = vunpack.c.l.b16 %v1386
        %v1723 = vunpack.c.h.b16 %v1386
        %v1724 = vunpack.c.l.b16 %v1387
        %v1725 = vunpack.c.h.b16 %v1387
        %v1726 = vunpack.c.l.b16 %v1388
        %v1727 = vunpack.c.h.b16 %v1388
        %v1728 = vunpack.c.l.b16 %v1389
        %v1729 = vunpack.c.h.b16 %v1389
        %v1730 = vunpack.c.l.b16 %v1390
        %v1731 = vunpack.c.h.b16 %v1390
        %v1732 = vunpack.c.l.b16 %v1391
        %v1733 = vunpack.c.h.b16 %v1391
        %v1734 = vunpack.c.l.b16 %v1392
        %v1735 = vunpack.c.h.b16 %v1392
        %v1736 = vunpack.c.l.b16 %v1393
        %v1737 = vunpack.c.h.b16 %v1393
        %v1738 = vunpack.c.l.b16 %v1394
        %v1739 = vunpack.c.h.b16 %v1394
        %v1740 = vunpack.c.l.b16 %v1395
        %v1741 = vunpack.c.h.b16 %v1395
        %v1742 = vunpack.c.l.b16 %v1396
        %v1743 = vunpack.c.h.b16 %v1396
        %v1744 = vunpack.c.l.b16 %v1397
        %v1745 = vunpack.c.h.b16 %v1397
        %v1746 = vunpack.c.l.b16 %v1398
        %v1747 = vunpack.c.h.b16 %v1398
        %v1748 = vunpack.c.l.b16 %v1399
        %v1749 = vunpack.c.h.b16 %v1399
        %v1750 = vunpack.c.l.b16 %v1400
        %v1751 = vunpack.c.h.b16 %v1400
        %v1752 = vunpack.c.l.b16 %v1401
        %v1753 = vunpack.c.h.b16 %v1401
        %v1754 = vunpack.c.l.b16 %v1402
        %v1755 = vunpack.c.h.b16 %v1402
        %v1756 = vunpack.c.l.b16 %v1403
        %v1757 = vunpack.c.h.b16 %v1403
        %v1758 = vunpack.c.l.b16 %v1404
        %v1759 = vunpack.c.h.b16 %v1404
        %v1760 = vunpack.c.l.b16 %v1405
        %v1761 = vunpack.c.h.b16 %v1405
        %v1762 = vunpack.c.l.b16 %v1406
        %v1763 = vunpack.c.h.b16 %v1406
        %v1764 = vunpack.c.l.b16 %v1407
        %v1765 = vunpack.c.h.b16 %v1407
        %v1766 = vunpack.c.l.b16 %v1408
        %v1767 = vunpack.c.h.b16 %v1408
        %v1768 = vunpack.c.l.b16 %v1409
        %v1769 = vunpack.c.h.b16 %v1409
        %v1770 = vunpack.c.l.b16 %v1410
        %v1771 = vunpack.c.h.b16 %v1410
        %v1772 = vunpack.c.l.b16 %v1411
        %v1773 = vunpack.c.h.b16 %v1411
        %v1774 = vunpack.c.l.b16 %v1412
        %v1775 = vunpack.c.h.b16 %v1412
        %v1776 = vunpack.c.l.b16 %v1413
        %v1777 = vunpack.c.h.b16 %v1413
        %v1778 = vunpack.c.l.b16 %v1414
        %v1779 = vunpack.c.h.b16 %v1414
        %v1780 = vunpack.c.l.b16 %v1415
        %v1781 = vunpack.c.h.b16 %v1415
        %v1782 = vunpack.c.l.b16 %v1416
        %v1783 = vunpack.c.h.b16 %v1416
        %v1784 = vunpack.c.l.b16 %v1417
        %v1785 = vunpack.c.h.b16 %v1417
        %v1786 = vunpack.c.l.b16 %v1418
        %v1787 = vunpack.c.h.b16 %v1418
        %v1788 = vunpack.c.l.b16 %v1419
        %v1789 = vunpack.c.h.b16 %v1419
        %v1790 = vunpack.c.l.b16 %v1420
        %v1791 = vunpack.c.h.b16 %v1420
        %v1792 = vunpack.c.l.b16 %v1421
        %v1793 = vunpack.c.h.b16 %v1421
        %v1794 = vunpack.c.l.b16 %v1422
        %v1795 = vunpack.c.h.b16 %v1422
        %v1796 = vunpack.c.l.b16 %v1423
        %v1797 = vunpack.c.h.b16 %v1423
        %v1798 = vunpack.c.l.b16 %v1424
        %v1799 = vunpack.c.h.b16 %v1424
        %v1800 = vunpack.c.l.b16 %v1425
        %v1801 = vunpack.c.h.b16 %v1425
        %v1802 = vunpack.c.l.b16 %v1426
        %v1803 = vunpack.c.h.b16 %v1426
        %v1804 = vunpack.c.l.b16 %v1427
        %v1805 = vunpack.c.h.b16 %v1427
        %v1806 = vunpack.c.l.b16 %v1428
        %v1807 = vunpack.c.h.b16 %v1428
        %v1808 = vunpack.c.l.b16 %v1429
        %v1809 = vunpack.c.h.b16 %v1429
        %v1810 = vunpack.c.l.b16 %v1430
        %v1811 = vunpack.c.h.b16 %v1430
        %v1812 = vunpack.c.l.b16 %v1431
        %v1813 = vunpack.c.h.b16 %v1431
        %v1814 = vunpack.c.l.b16 %v1432
        %v1815 = vunpack.c.h.b16 %v1432
        %v1816 = vunpack.c.l.b16 %v1433
        %v1817 = vunpack.c.h.b16 %v1433
        %v1818 = vunpack.c.l.b16 %v1434
        %v1819 = vunpack.c.h.b16 %v1434
        %v1820 = vunpack.c.l.b16 %v1435
        %v1821 = vunpack.c.h.b16 %v1435
        %v1822 = vunpack.c.l.b16 %v1436
        %v1823 = vunpack.c.h.b16 %v1436
        %v1824 = vunpack.c.l.b16 %v1437
        %v1825 = vunpack.c.h.b16 %v1437
        %v1826 = vunpack.c.l.b16 %v1438
        %v1827 = vunpack.c.h.b16 %v1438
        %v1828 = vunpack.c.l.b16 %v1439
        %v1829 = vunpack.c.h.b16 %v1439
        %v1830 = vunpack.c.l.b16 %v1440
        %v1831 = vunpack.c.h.b16 %v1440
        %v1832 = vunpack.c.l.b16 %v1441
        %v1833 = vunpack.c.h.b16 %v1441
        %v1834 = vunpack.c.l.b16 %v1442
        %v1835 = vunpack.c.h.b16 %v1442
        %v1836 = vunpack.c.l.b16 %v1443
        %v1837 = vunpack.c.h.b16 %v1443
        %v1838 = vunpack.c.l.b16 %v1444
        %v1839 = vunpack.c.h.b16 %v1444
        %v1840 = vunpack.c.l.b16 %v1445
        %v1841 = vunpack.c.h.b16 %v1445
        %v1842 = vunpack.c.l.b16 %v1446
        %v1843 = vunpack.c.h.b16 %v1446
        %v1844 = vunpack.c.l.b16 %v1447
        %v1845 = vunpack.c.h.b16 %v1447
        %v1846 = vunpack.c.l.b16 %v1448
        %v1847 = vunpack.c.h.b16 %v1448
        %v1848 = vunpack.c.l.b16 %v1449
        %v1849 = vunpack.c.h.b16 %v1449
        %v1850 = vunpack.c.l.b16 %v1450
        %v1851 = vunpack.c.h.b16 %v1450
        %v1852 = vunpack.c.l.b16 %v1451
        %v1853 = vunpack.c.h.b16 %v1451
        %v1854 = vunpack.c.l.b16 %v1452
        %v1855 = vunpack.c.h.b16 %v1452
        %v1856 = vunpack.c.l.b16 %v1453
        %v1857 = vunpack.c.h.b16 %v1453
        %v1858 = vunpack.c.l.b16 %v1454
        %v1859 = vunpack.c.h.b16 %v1454
        %v1860 = vunpack.c.l.b16 %v1455
        %v1861 = vunpack.c.h.b16 %v1455
        %v1862 = vunpack.c.l.b16 %v1456
        %v1863 = vunpack.c.h.b16 %v1456
        %v1864 = vunpack.c.l.b16 %v1457
        %v1865 = vunpack.c.h.b16 %v1457
        %v1866 = vunpack.c.l.b16 %v1458
        %v1867 = vunpack.c.h.b16 %v1458
        %v1868 = vunpack.c.l.b16 %v1459
        %v1869 = vunpack.c.h.b16 %v1459
        %v1870 = vunpack.c.l.b16 %v1460
        %v1871 = vunpack.c.h.b16 %v1460
        %v1872 = vunpack.c.l.b16 %v1461
        %v1873 = vunpack.c.h.b16 %v1461
        %v1874 = vunpack.c.l.b16 %v1462
        %v1875 = vunpack.c.h.b16 %v1462
        %v1876 = vunpack.c.l.b16 %v1463
        %v1877 = vunpack.c.h.b16 %v1463
        %v1878 = vunpack.c.l.b16 %v1464
        %v1879 = vunpack.c.h.b16 %v1464
        %v1880 = vunpack.c.l.b16 %v1465
        %v1881 = vunpack.c.h.b16 %v1465
        %v1882 = vunpack.c.l.b16 %v1466
        %v1883 = vunpack.c.h.b16 %v1466
        %v1884 = vunpack.c.l.b16 %v1467
        %v1885 = vunpack.c.h.b16 %v1467
        %v1886 = vunpack.c.l.b16 %v1468
        %v1887 = vunpack.c.h.b16 %v1468
        %v1888 = vunpack.c.l.b16 %v1469
        %v1889 = vunpack.c.h.b16 %v1469
        %v1890 = vunpack.c.l.b16 %v1470
        %v1891 = vunpack.c.h.b16 %v1470
        %v1892 = vunpack.c.l.b16 %v1471
        %v1893 = vunpack.c.h.b16 %v1471
        %v1894 = vunpack.c.l.b16 %v1472
        %v1895 = vunpack.c.h.b16 %v1472
        %v1896 = vunpack.c.l.b16 %v1473
        %v1897 = vunpack.c.h.b16 %v1473
        %v1898 = vunpack.c.l.b16 %v1474
        %v1899 = vunpack.c.h.b16 %v1474
        %v1900 = vunpack.c.l.b16 %v1475
        %v1901 = vunpack.c.h.b16 %v1475
        %v1902 = vunpack.c.l.b16 %v1476
        %v1903 = vunpack.c.h.b16 %v1476
        %v1904 = vunpack.c.l.b16 %v1477
        %v1905 = vunpack.c.h.b16 %v1477
        %v1906 = vunpack.c.l.b16 %v1478
        %v1907 = vunpack.c.h.b16 %v1478
        %v1908 = vunpack.c.l.b16 %v1479
        %v1909 = vunpack.c.h.b16 %v1479
        %v1910 = vpack.c.b16 %v1656, %v1654
        %v1911 = vpack.c.b16 %v1657, %v1655
        %v1912 = vpack.c.b16 %v1660, %v1658
        %v1913 = vpack.c.b16 %v1661, %v1659
        %v1914 = vpack.c.b16 %v1664, %v1662
        %v1915 = vpack.c.b16 %v1665, %v1663
        %v1916 = vpack.c.b16 %v1668, %v1666
        %v1917 = vpack.c.b16 %v1669, %v1667
        %v1918 = vpack.c.b16 %v1672, %v1670
        %v1919 = vpack.c.b16 %v1673, %v1671
        %v1920 = vpack.c.b16 %v1676, %v1674
        %v1921 = vpack.c.b16 %v1677, %v1675
        %v1922 = vpack.c.b16 %v1680, %v1678
        %v1923 = vpack.c.b16 %v1681, %v1679
        %v1924 = vpack.c.b16 %v1684, %v1682
        %v1925 = vpack.c.b16 %v1685, %v1683
        %v1926 = vpack.c.b16 %v1688, %v1686
        %v1927 = vpack.c.b16 %v1689, %v1687
        %v1928 = vpack.c.b16 %v1692, %v1690
        %v1929 = vpack.c.b16 %v1693, %v1691
        %v1930 = vpack.c.b16 %v1696, %v1694
        %v1931 = vpack.c.b16 %v1697, %v1695
        %v1932 = vpack.c.b16 %v1700, %v1698
        %v1933 = vpack.c.b16 %v1701, %v1699
        %v1934 = vpack.c.b16 %v1704, %v1702
        %v1935 = vpack.c.b16 %v1705, %v1703
        %v1936 = vpack.c.b16 %v1708, %v1706
        %v1937 = vpack.c.b16 %v1709, %v1707
        %v1938 = vpack.c.b16 %v1712, %v1710
        %v1939 = vpack.c.b16 %v1713, %v1711
        %v1940 = vpack.c.b16 %v1716, %v1714
        %v1941 = vpack.c.b16 %v1717, %v1715
        %v1942 = vpack.c.b16 %v1720, %v1718
        %v1943 = vpack.c.b16 %v1721, %v1719
        %v1944 = vpack.c.b16 %v1724, %v1722
        %v1945 = vpack.c.b16 %v1725, %v1723
        %v1946 = vpack.c.b16 %v1728, %v1726
        %v1947 = vpack.c.b16 %v1729, %v1727
        %v1948 = vpack.c.b16 %v1732, %v1730
        %v1949 = vpack.c.b16 %v1733, %v1731
        %v1950 = vpack.c.b16 %v1736, %v1734
        %v1951 = vpack.c.b16 %v1737, %v1735
        %v1952 = vpack.c.b16 %v1740, %v1738
        %v1953 = vpack.c.b16 %v1741, %v1739
        %v1954 = vpack.c.b16 %v1744, %v1742
        %v1955 = vpack.c.b16 %v1745, %v1743
        %v1956 = vpack.c.b16 %v1748, %v1746
        %v1957 = vpack.c.b16 %v1749, %v1747
        %v1958 = vpack.c.b16 %v1752, %v1750
        %v1959 = vpack.c.b16 %v1753, %v1751
        %v1960 = vpack.c.b16 %v1756, %v1754
        %v1961 = vpack.c.b16 %v1757, %v1755
        %v1962 = vpack.c.b16 %v1760, %v1758
        %v1963 = vpack.c.b16 %v1761, %v1759
        %v1964 = vpack.c.b16 %v1764, %v1762
        %v1965 = vpack.c.b16 %v1765, %v1763
        %v1966 = vpack.c.b16 %v1768, %v1766
        %v1967 = vpack.c.b16 %v1769, %v1767
        %v1968 = vpack.c.b16 %v1772, %v1770
        %v1969 = vpack.c.b16 %v1773, %v1771
        %v1970 = vpack.c.b16 %v1776, %v1774
        %v1971 = vpack.c.b16 %v1777, %v1775
        %v1972 = vpack.c.b16 %v1780, %v1778
        %v1973 = vpack.c.b16 %v1781, %v1779
        %v1974 = vpack.c.b16 %v1784, %v1782
        %v1975 = vpack.c.b16 %v1785, %v1783
        %v1976 = vpack.c.b16 %v1788, %v1786
        %v1977 = vpack.c.b16 %v1789, %v1787
        %v1978 = vpack.c.b16 %v1792, %v1790
        %v1979 = vpack.c.b16 %v1793, %v1791
        %v1980 = vpack.c.b16 %v1796, %v1794
        %v1981 = vpack.c.b16 %v1797, %v1795
        %v1982 = vpack.c.b16 %v1800, %v1798
        %v1983 = vpack.c.b16 %v1801, %v1799
        %v1984 = vpack.c.b16 %v1804, %v1802
        %v1985 = vpack.c.b16 %v1805, %v1803
        %v1986 = vpack.c.b16 %v1808, %v1806
        %v1987 = vpack.c.b16 %v1809, %v1807
        %v1988 = vpack.c.b16 %v1812, %v1810
        %v1989 = vpack.c.b16 %v1813, %v1811
        %v1990 = vpack.c.b16 %v1816, %v1814
        %v1991 = vpack.c.b16 %v1817, %v1815
        %v1992 = vpack.c.b16 %v1820, %v1818
        %v1993 = vpack.c.b16 %v1821, %v1819
        %v1994 = vpack.c.b16 %v1824, %v1822
        %v1995 = vpack.c.b16 %v1825, %v1823
        %v1996 = vpack.c.b16 %v1828, %v1826
        %v1997 = vpack.c.b16 %v1829, %v1827
        %v1998 = vpack.c.b16 %v1832, %v1830
        %v1999 = vpack.c.b16 %v1833, %v1831
        %v2000 = vpack.c.b16 %v1836, %v1834
        %v2001 = vpack.c.b16 %v1837, %v1835
        %v2002 = vpack.c.b16 %v1840, %v1838
        %v2003 = vpack.c.b16 %v1841, %v1839
        %v2004 = vpack.c.b16 %v1844, %v1842
        %v2005 = vpack.c.b16 %v1845, %v1843
        %v2006 = vpack.c.b16 %v1848, %v1846
        %v2007 = vpack.c.b16 %v1849, %v1847
        %v2008 = vpack.c.b16 %v1852, %v1850
        %v2009 = vpack.c.b16 %v1853, %v1851
        %v2010 = vpack.c.b16 %v1856, %v1854
        %v2011 = vpack.c.b16 %v1857, %v1855
        %v2012 = vpack.c.b16 %v1860, %v1858
        %v2013 = vpack.c.b16 %v1861, %v1859
        %v2014 = vpack.c.b16 %v1864, %v1862
        %v2015 = vpack.c.b16 %v1865, %v1863
        %v2016 = vpack.c.b16 %v1868, %v1866
        %v2017 = vpack.c.b16 %v1869, %v1867
        %v2018 = vpack.c.b16 %v1872, %v1870
        %v2019 = vpack.c.b16 %v1873, %v1871
        %v2020 = vpack.c.b16 %v1876, %v1874
        %v2021 = vpack.c.b16 %v1877, %v1875
        %v2022 = vpack.c.b16 %v1880, %v1878
        %v2023 = vpack.c.b16 %v1881, %v1879
        %v2024 = vpack.c.b16 %v1884, %v1882
        %v2025 = vpack.c.b16 %v1885, %v1883
        %v2026 = vpack.c.b16 %v1888, %v1886
        %v2027 = vpack.c.b16 %v1889, %v1887
        %v2028 = vpack.c.b16 %v1892, %v1890
        %v2029 = vpack.c.b16 %v1893, %v1891
        %v2030 = vpack.c.b16 %v1896, %v1894
        %v2031 = vpack.c.b16 %v1897, %v1895
        %v2032 = vpack.c.b16 %v1900, %v1898
        %v2033 = vpack.c.b16 %v1901, %v1899
        %v2034 = vpack.c.b16 %v1904, %v1902
        %v2035 = vpack.c.b16 %v1905, %v1903
        %v2036 = vpack.c.b16 %v1908, %v1906
        %v2037 = vpack.c.b16 %v1909, %v1907
        %2166 = vmatpush.bf16.msra.mxu0 %v1924
        %2167 = vmatpush.bf16.msra.mxu0 %v1922
        %2168 = vmatpush.bf16.msra.mxu0 %v1920
        %2169 = vmatpush.bf16.msra.mxu0 %v1918
        %2170 = vmatpush.bf16.msra.mxu0 %v1916
        %2171 = vmatpush.bf16.msra.mxu0 %v1914
        %2172 = vmatpush.bf16.msra.mxu0 %v1912
        %2173 = vmatpush.bf16.msra.mxu0 %v1910
        %2174 = vmatmul.bf16.gmra.mxu0 %v1510
        %v2175 = vpop.f32.mrf.mxu0
        %v2176 = vadd.f32 %v1482, %v2175
        %v2177 = vpop.f32.mrf.mxu0
        %v2178 = vadd.f32 %v1482, %v2177
        %2179 = vdwg.mxu0
        %2180 = vmatpush.bf16.msra.mxu0 %v1940
        %2181 = vmatpush.bf16.msra.mxu0 %v1938
        %2182 = vmatpush.bf16.msra.mxu0 %v1936
        %2183 = vmatpush.bf16.msra.mxu0 %v1934
        %2184 = vmatpush.bf16.msra.mxu0 %v1932
        %2185 = vmatpush.bf16.msra.mxu0 %v1930
        %2186 = vmatpush.bf16.msra.mxu0 %v1928
        %2187 = vmatpush.bf16.msra.mxu0 %v1926
        %2188 = vmatmul.bf16.gmra.mxu0 %v1511
        %v2189 = vpop.f32.mrf.mxu0
        %v2190 = vadd.f32 %v2176, %v2189
        %v2191 = vpop.f32.mrf.mxu0
        %v2192 = vadd.f32 %v2178, %v2191
        %2193 = vdwg.mxu0
        %2194 = vmatpush.bf16.msra.mxu0 %v1956
        %2195 = vmatpush.bf16.msra.mxu0 %v1954
        %2196 = vmatpush.bf16.msra.mxu0 %v1952
        %2197 = vmatpush.bf16.msra.mxu0 %v1950
        %2198 = vmatpush.bf16.msra.mxu0 %v1948
        %2199 = vmatpush.bf16.msra.mxu0 %v1946
        %2200 = vmatpush.bf16.msra.mxu0 %v1944
        %2201 = vmatpush.bf16.msra.mxu0 %v1942
        %2202 = vmatmul.bf16.gmra.mxu0 %v1512
        %v2203 = vpop.f32.mrf.mxu0
        %v2204 = vadd.f32 %v2190, %v2203
        %v2205 = vpop.f32.mrf.mxu0
        %v2206 = vadd.f32 %v2192, %v2205
        %2207 = vdwg.mxu0
        %2208 = vmatpush.bf16.msra.mxu0 %v1972
        %2209 = vmatpush.bf16.msra.mxu0 %v1970
        %2210 = vmatpush.bf16.msra.mxu0 %v1968
        %2211 = vmatpush.bf16.msra.mxu0 %v1966
        %2212 = vmatpush.bf16.msra.mxu0 %v1964
        %2213 = vmatpush.bf16.msra.mxu0 %v1962
        %2214 = vmatpush.bf16.msra.mxu0 %v1960
        %2215 = vmatpush.bf16.msra.mxu0 %v1958
        %2216 = vmatmul.bf16.gmra.mxu0 %v1513
        %v2217 = vpop.f32.mrf.mxu0
        %v2218 = vadd.f32 %v2204, %v2217
        %v2219 = vpop.f32.mrf.mxu0
        %v2220 = vadd.f32 %v2206, %v2219
        %2221 = vdwg.mxu0
        %2222 = vmatpush.bf16.msra.mxu0 %v1988
        %2223 = vmatpush.bf16.msra.mxu0 %v1986
        %2224 = vmatpush.bf16.msra.mxu0 %v1984
        %2225 = vmatpush.bf16.msra.mxu0 %v1982
        %2226 = vmatpush.bf16.msra.mxu0 %v1980
        %2227 = vmatpush.bf16.msra.mxu0 %v1978
        %2228 = vmatpush.bf16.msra.mxu0 %v1976
        %2229 = vmatpush.bf16.msra.mxu0 %v1974
        %2230 = vmatmul.bf16.gmra.mxu0 %v1514
        %v2231 = vpop.f32.mrf.mxu0
        %v2232 = vadd.f32 %v2218, %v2231
        %v2233 = vpop.f32.mrf.mxu0
        %v2234 = vadd.f32 %v2220, %v2233
        %2235 = vdwg.mxu0
        %2236 = vmatpush.bf16.msra.mxu0 %v2004
        %2237 = vmatpush.bf16.msra.mxu0 %v2002
        %2238 = vmatpush.bf16.msra.mxu0 %v2000
        %2239 = vmatpush.bf16.msra.mxu0 %v1998
        %2240 = vmatpush.bf16.msra.mxu0 %v1996
        %2241 = vmatpush.bf16.msra.mxu0 %v1994
        %2242 = vmatpush.bf16.msra.mxu0 %v1992
        %2243 = vmatpush.bf16.msra.mxu0 %v1990
        %2244 = vmatmul.bf16.gmra.mxu0 %v1515
        %v2245 = vpop.f32.mrf.mxu0
        %v2246 = vadd.f32 %v2232, %v2245
        %v2247 = vpop.f32.mrf.mxu0
        %v2248 = vadd.f32 %v2234, %v2247
        %2249 = vdwg.mxu0
        %2250 = vmatpush.bf16.msra.mxu0 %v2020
        %2251 = vmatpush.bf16.msra.mxu0 %v2018
        %2252 = vmatpush.bf16.msra.mxu0 %v2016
        %2253 = vmatpush.bf16.msra.mxu0 %v2014
        %2254 = vmatpush.bf16.msra.mxu0 %v2012
        %2255 = vmatpush.bf16.msra.mxu0 %v2010
        %2256 = vmatpush.bf16.msra.mxu0 %v2008
        %2257 = vmatpush.bf16.msra.mxu0 %v2006
        %2258 = vmatmul.bf16.gmra.mxu0 %v1516
        %v2259 = vpop.f32.mrf.mxu0
        %v2260 = vadd.f32 %v2246, %v2259
        %v2261 = vpop.f32.mrf.mxu0
        %v2262 = vadd.f32 %v2248, %v2261
        %2263 = vdwg.mxu0
        %2264 = vmatpush.bf16.msra.mxu0 %v2036
        %2265 = vmatpush.bf16.msra.mxu0 %v2034
        %2266 = vmatpush.bf16.msra.mxu0 %v2032
        %2267 = vmatpush.bf16.msra.mxu0 %v2030
        %2268 = vmatpush.bf16.msra.mxu0 %v2028
        %2269 = vmatpush.bf16.msra.mxu0 %v2026
        %2270 = vmatpush.bf16.msra.mxu0 %v2024
        %2271 = vmatpush.bf16.msra.mxu0 %v2022
        %2272 = vmatmul.bf16.gmra.mxu0 %v1517
        %v2273 = vpop.f32.mrf.mxu0
        %v2274 = vadd.f32 %v2260, %v2273
        %v2275 = vpop.f32.mrf.mxu0
        %v2276 = vadd.f32 %v2262, %v2275
        %2277 = vdwg.mxu0
        %2278 = vmatpush.bf16.msra.mxu0 %v1925
        %2279 = vmatpush.bf16.msra.mxu0 %v1923
        %2280 = vmatpush.bf16.msra.mxu0 %v1921
        %2281 = vmatpush.bf16.msra.mxu0 %v1919
        %2282 = vmatpush.bf16.msra.mxu0 %v1917
        %2283 = vmatpush.bf16.msra.mxu0 %v1915
        %2284 = vmatpush.bf16.msra.mxu0 %v1913
        %2285 = vmatpush.bf16.msra.mxu0 %v1911
        %2286 = vmatmul.bf16.gmra.mxu0 %v1510
        %v2287 = vpop.f32.mrf.mxu0
        %v2288 = vadd.f32 %v1483, %v2287
        %v2289 = vpop.f32.mrf.mxu0
        %v2290 = vadd.f32 %v1483, %v2289
        %2291 = vdwg.mxu0
        %2292 = vmatpush.bf16.msra.mxu0 %v1941
        %2293 = vmatpush.bf16.msra.mxu0 %v1939
        %2294 = vmatpush.bf16.msra.mxu0 %v1937
        %2295 = vmatpush.bf16.msra.mxu0 %v1935
        %2296 = vmatpush.bf16.msra.mxu0 %v1933
        %2297 = vmatpush.bf16.msra.mxu0 %v1931
        %2298 = vmatpush.bf16.msra.mxu0 %v1929
        %2299 = vmatpush.bf16.msra.mxu0 %v1927
        %2300 = vmatmul.bf16.gmra.mxu0 %v1511
        %v2301 = vpop.f32.mrf.mxu0
        %v2302 = vadd.f32 %v2288, %v2301
        %v2303 = vpop.f32.mrf.mxu0
        %v2304 = vadd.f32 %v2290, %v2303
        %2305 = vdwg.mxu0
        %2306 = vmatpush.bf16.msra.mxu0 %v1957
        %2307 = vmatpush.bf16.msra.mxu0 %v1955
        %2308 = vmatpush.bf16.msra.mxu0 %v1953
        %2309 = vmatpush.bf16.msra.mxu0 %v1951
        %2310 = vmatpush.bf16.msra.mxu0 %v1949
        %2311 = vmatpush.bf16.msra.mxu0 %v1947
        %2312 = vmatpush.bf16.msra.mxu0 %v1945
        %2313 = vmatpush.bf16.msra.mxu0 %v1943
        %2314 = vmatmul.bf16.gmra.mxu0 %v1512
        %v2315 = vpop.f32.mrf.mxu0
        %v2316 = vadd.f32 %v2302, %v2315
        %v2317 = vpop.f32.mrf.mxu0
        %v2318 = vadd.f32 %v2304, %v2317
        %2319 = vdwg.mxu0
        %2320 = vmatpush.bf16.msra.mxu0 %v1973
        %2321 = vmatpush.bf16.msra.mxu0 %v1971
        %2322 = vmatpush.bf16.msra.mxu0 %v1969
        %2323 = vmatpush.bf16.msra.mxu0 %v1967
        %2324 = vmatpush.bf16.msra.mxu0 %v1965
        %2325 = vmatpush.bf16.msra.mxu0 %v1963
        %2326 = vmatpush.bf16.msra.mxu0 %v1961
        %2327 = vmatpush.bf16.msra.mxu0 %v1959
        %2328 = vmatmul.bf16.gmra.mxu0 %v1513
        %v2329 = vpop.f32.mrf.mxu0
        %v2330 = vadd.f32 %v2316, %v2329
        %v2331 = vpop.f32.mrf.mxu0
        %v2332 = vadd.f32 %v2318, %v2331
        %2333 = vdwg.mxu0
        %2334 = vmatpush.bf16.msra.mxu0 %v1989
        %2335 = vmatpush.bf16.msra.mxu0 %v1987
        %2336 = vmatpush.bf16.msra.mxu0 %v1985
        %2337 = vmatpush.bf16.msra.mxu0 %v1983
        %2338 = vmatpush.bf16.msra.mxu0 %v1981
        %2339 = vmatpush.bf16.msra.mxu0 %v1979
        %2340 = vmatpush.bf16.msra.mxu0 %v1977
        %2341 = vmatpush.bf16.msra.mxu0 %v1975
        %2342 = vmatmul.bf16.gmra.mxu0 %v1514
        %v2343 = vpop.f32.mrf.mxu0
        %v2344 = vadd.f32 %v2330, %v2343
        %v2345 = vpop.f32.mrf.mxu0
        %v2346 = vadd.f32 %v2332, %v2345
        %2347 = vdwg.mxu0
        %2348 = vmatpush.bf16.msra.mxu0 %v2005
        %2349 = vmatpush.bf16.msra.mxu0 %v2003
        %2350 = vmatpush.bf16.msra.mxu0 %v2001
        %2351 = vmatpush.bf16.msra.mxu0 %v1999
        %2352 = vmatpush.bf16.msra.mxu0 %v1997
        %2353 = vmatpush.bf16.msra.mxu0 %v1995
        %2354 = vmatpush.bf16.msra.mxu0 %v1993
        %2355 = vmatpush.bf16.msra.mxu0 %v1991
        %2356 = vmatmul.bf16.gmra.mxu0 %v1515
        %v2357 = vpop.f32.mrf.mxu0
        %v2358 = vadd.f32 %v2344, %v2357
        %v2359 = vpop.f32.mrf.mxu0
        %v2360 = vadd.f32 %v2346, %v2359
        %2361 = vdwg.mxu0
        %2362 = vmatpush.bf16.msra.mxu0 %v2021
        %2363 = vmatpush.bf16.msra.mxu0 %v2019
        %2364 = vmatpush.bf16.msra.mxu0 %v2017
        %2365 = vmatpush.bf16.msra.mxu0 %v2015
        %2366 = vmatpush.bf16.msra.mxu0 %v2013
        %2367 = vmatpush.bf16.msra.mxu0 %v2011
        %2368 = vmatpush.bf16.msra.mxu0 %v2009
        %2369 = vmatpush.bf16.msra.mxu0 %v2007
        %2370 = vmatmul.bf16.gmra.mxu0 %v1516
        %v2371 = vpop.f32.mrf.mxu0
        %v2372 = vadd.f32 %v2358, %v2371
        %v2373 = vpop.f32.mrf.mxu0
        %v2374 = vadd.f32 %v2360, %v2373
        %2375 = vdwg.mxu0
        %2376 = vmatpush.bf16.msra.mxu0 %v2037
        %2377 = vmatpush.bf16.msra.mxu0 %v2035
        %2378 = vmatpush.bf16.msra.mxu0 %v2033
        %2379 = vmatpush.bf16.msra.mxu0 %v2031
        %2380 = vmatpush.bf16.msra.mxu0 %v2029
        %2381 = vmatpush.bf16.msra.mxu0 %v2027
        %2382 = vmatpush.bf16.msra.mxu0 %v2025
        %2383 = vmatpush.bf16.msra.mxu0 %v2023
        %2384 = vmatmul.bf16.gmra.mxu0 %v1517
        %v2385 = vpop.f32.mrf.mxu0
        %v2386 = vadd.f32 %v2372, %v2385
        %v2387 = vpop.f32.mrf.mxu0
        %v2388 = vadd.f32 %v2374, %v2387
        %2389 = vdwg.mxu0
        %2390 = vst [vmem:[%s293] sm:$0xff] %v2274
        %2391 = vst [vmem:[%s293 + $0x8] sm:$0xff] %v2386
        %2392 = vst [vmem:[%s293 + $0x10] sm:$0xff] %v2276
        %2393 = vst [vmem:[%s293 + $0x18] sm:$0xff] %v2388
        %s2394 = sand.u32 %s142, 1
        %s2395 = scalar_lea.sflag [#allocation5], %s2394
        %s2396 = sand.u32 %s142, 1
        %s2397 = smul.addr %s2396, 32
        %s2398 = scalar_lea.vmem [#allocation11], %s2397
        // Predicated region
        $region57: #{tpu_custom_call.1} parent=39 // pred_check
          %p2399 = pneg %p152
        $region58: #{tpu_custom_call.1} parent=39 // pred_check_branch
          %2401 = sbr.rel (%p2399) target = $region60
        $region59: #{tpu_custom_call.1} parent=39 // pred_region
          %s2402 = smul.u32 2, %s24
          %2404 = vsyncadd %s2395, 0
          %s2405 = smul.addr %s2402, 2
          %s2406 = smul.addr %s2405, 8
          %s2407 = scalar_lea.hbm %s5, %s2406
          %s2408 = sshll.u32 %s2398, 4
          %s2409 = int_to_ptr.vmem [resolvable:$true] %s2408
          %s2410 = sshll.u32 %s2407, 4
          %s2411 = int_to_ptr.hbm [resolvable:$true] %s2410
          %2416 = dma.vmem_to_hbm [thread:$0]  %s2409, 512, %s2411, %s2395, 256, 256, 16
        $region60: #{tpu_custom_call.1} parent=39 // pred_fallthru
          _
      $region40: #{tpu_custom_call.1} parent=5 // pred_fallthru
        _
      %p2417 = scmp.le.s32.totalorder 2, %s19
      // Predicated region
      $region61: #{tpu_custom_call.1} parent=5 // pred_check
        %p2418 = pneg %p2417
      $region62: #{tpu_custom_call.1} parent=5 // pred_check_branch
        %2420 = sbr.rel (%p2418) target = $region64
      $region63: #{tpu_custom_call.1} parent=5 // pred_region
        %s2421 = ssub.s32 %s19, 2
        // Predicated region
        $region65: #{tpu_custom_call.1} parent=63 // pred_check
          %p2422 = pneg %p158
        $region66: #{tpu_custom_call.1} parent=63 // pred_check_branch
          %2424 = sbr.rel (%p2422) target = $region68
        $region67: #{tpu_custom_call.1} parent=63 // pred_region
          %s2425 = sand.u32 %s143, 1
          %s2426 = scalar_lea.sflag [#allocation5], %s2425
          %s2427 = sand.u32 %s143, 1
          %s2428 = smul.addr %s2427, 32
          %s2429 = scalar_lea.vmem [#allocation11], %s2428
          %2431 = dma.done %s2426, 512
        $region68: #{tpu_custom_call.1} parent=63 // pred_fallthru
          _
      $region64: #{tpu_custom_call.1} parent=5 // pred_fallthru
        _
    $region6: #{tpu_custom_call.1} parent=1 // loop_footer
      %s23 = sadd.s32 1, %s19
    $region7: #{tpu_custom_call.1} parent=1 // loop_footer_branch
      %18 = sbr.rel target = $region3
    $region8: #{tpu_custom_call.1} parent=1 // loop_exit
      _
    %2432 = vsyncpa [#allocation4], 1
    %s2433 = scalar_lea.sflag [#allocation4], 1
    %2434 = vsyncpa %s2433, 1
    %2435 = vsyncpa [#allocation7], 1
    %2436 = vsyncpa [#allocation10], 1
    %2437 = vsyncpa [#allocation5], 1
    %s2438 = scalar_lea.sflag [#allocation5], 1
    %2439 = vsyncpa %s2438, 1

</llo_original>
